<compile_context>
chip_gen: v6e
topology: v6e:2x2x1
jax: 0.10.0
libtpu: 0.0.40
codegen_flags: <defaults>
</compile_context>

<pallas_src>
import functools

import jax
import jax.numpy as jnp
import numpy as np
from jax.experimental import pallas as pl
from jax.experimental.pallas import tpu as pltpu

BN_EPS = 1e-5
LANE = 128


def _round_up(v, m):
    return (v + m - 1) // m * m


def _pick_row_tile(h_out, target):
    t = max(1, min(int(target), h_out))
    while h_out % t:
        t -= 1
    return t


def fold_bn(bn):
    scale = bn["gamma"] / jnp.sqrt(bn["var"] + BN_EPS)
    bias = bn["beta"] - bn["mean"] * scale
    return scale, bias


def _vmem_limit_bytes(m_in, m_acc, cin_pad, ch_pad, co_pad, itemsize,
                      has_expand):
    io = 2 * (m_in * cin_pad + m_acc * co_pad) * itemsize          # dbl-buffered tiles
    wts = 2 * ((cin_pad * ch_pad if has_expand else 0) + 10 * ch_pad
               + ch_pad * co_pad + co_pad) * itemsize
    scratch = m_in * ch_pad * 4                                    # hidden slab (f32)
    work = 3 * m_acc * ch_pad * 4                                  # dw accumulator + temps
    est = io + wts + scratch + work + (4 << 20)
    # Cap well under v7x's 64 MiB physical VMEM (v5e/v6e have 128 MiB).
    return int(min(max(est, 16 << 20), 48 << 20))


# ------------------------------ fused Pallas kernel --------------------------


def _fused_kernel(tap_offsets, m_acc, res_offset, has_expand, ch_pad, co_pad,
                  *refs):
    """expand 1x1 -> depthwise 3x3 -> project 1x1, all BN/ReLU6/residual fused.

    All tensors are flat (rows, channels) slabs with channels on the 128-wide
    lane axis: the matmuls need no reshapes and each depthwise tap is just a
    row-shifted contiguous slice of the hidden slab.
    """
    if has_expand:
        x_ref, w1_ref, wdw_ref, b2_ref, w2_ref, b3_ref, o_ref, hid_ref = refs
    else:
        x_ref, wdw_ref, b2_ref, w2_ref, b3_ref, o_ref, hid_ref = refs

    # Stage 1: expanding 1x1 conv on the MXU.  BN scale is folded into w1 and
    # the BN bias rides on the extra "valid" input channel, so the zero-padded
    # halo rows/cols come out exactly 0 after ReLU6.
    if has_expand:
        h = jnp.dot(x_ref[...], w1_ref[...],
                    preferred_element_type=jnp.float32)
        h = jnp.clip(h, 0.0, 6.0)
    else:
        h = x_ref[:, :ch_pad].astype(jnp.float32)
    hid_ref[...] = h  # park the (expanded) hidden slab in VMEM scratch

    # Stage 2: depthwise 3x3 conv + BN + ReLU6.  9 shifted taps; the sublane
    # shifts go through the XLU and overlap the VPU multiply-accumulate.
    wdw = wdw_ref[...]                          # (9, ch_pad), BN scale folded
    off0 = tap_offsets[0]
    acc = hid_ref[off0:off0 + m_acc, :] * wdw[0:1, :]
    for d in range(1, 9):
        off = tap_offsets[d]
        acc = acc + hid_ref[off:off + m_acc, :] * wdw[d:d + 1, :]
    dw = jnp.clip(acc + b2_ref[...], 0.0, 6.0)

    # Stage 3: projecting 1x1 conv + BN, optional residual straight from the
    # input slab (no extra HBM read for the skip connection).
    y = jnp.dot(dw, w2_ref[...], preferred_element_type=jnp.float32)
    y = y + b3_ref[...]
    if res_offset is not None:
        y = y + x_ref[res_offset:res_offset + m_acc, :co_pad].astype(jnp.float32)
    o_ref[...] = y.astype(o_ref.dtype)


# ------------------------------- module forward ------------------------------


def _prepare_weights(params, inp, hidden, oup, has_expand,
                     cin_pad, ch_pad, co_pad, dtype):
    s2, b2 = fold_bn(params["bn2"])
    s3, b3 = fold_bn(params["bn3"])

    if has_expand:
        s1, b1 = fold_bn(params["bn1"])
        w1 = params["w_expand"] * s1[None, :]                  # (inp, hidden)
        w1a = jnp.zeros((cin_pad, ch_pad), jnp.float32)
        w1a = w1a.at[:inp, :hidden].set(w1)
        w1a = w1a.at[inp, :hidden].set(b1)                     # bias row ("valid" ch)
        w1a = w1a.astype(dtype)
    else:
        w1a = None

    wdw = (params["w_dw"] * s2[None, None, :]).reshape(9, hidden)
    wdw9 = jnp.zeros((9, ch_pad), jnp.float32).at[:, :hidden].set(wdw)
    wdw9 = wdw9.astype(dtype)
    b2p = jnp.zeros((1, ch_pad), jnp.float32).at[0, :hidden].set(b2)

    w2 = params["w_proj"] * s3[None, :]                        # (hidden, oup)
    w2p = jnp.zeros((ch_pad, co_pad), jnp.float32).at[:hidden, :oup].set(w2)
    w2p = w2p.astype(dtype)
    b3p = jnp.zeros((1, co_pad), jnp.float32).at[0, :oup].set(b3)
    return w1a, wdw9, b2p, w2p, b3p


def inverted_residual(params, x_nchw, *, stride, inp, oup, expand_ratio,
                      row_tile=16):
    assert stride in (1, 2)
    hidden = int(round(inp * expand_ratio))
    has_expand = expand_ratio != 1
    use_res = stride == 1 and inp == oup

    x = jnp.transpose(x_nchw, (0, 2, 3, 1))                    # NCHW -> NHWC
    N, H, W, _ = x.shape
    h_out = (H - 1) // stride + 1
    w_out = (W - 1) // stride + 1

    cin_pad = _round_up(inp + 1, LANE)       # +1: "valid" channel carries bias
    ch_pad = _round_up(hidden, LANE)
    co_pad = _round_up(oup, LANE)

    th = _pick_row_tile(h_out, row_tile)     # output rows per grid step
    n_t = h_out // th
    wc = W + 2                               # zero-padded width

    if stride == 1:
        n_rows = th + 2                                        # tile rows + halo
        row_offs, col_offs = (0, 1, 2), (0, 1, 2)
    else:
        n_rows = 2 * th + 2                                    # even rows | odd rows
        row_offs, col_offs = (0, th + 1, 1), (0, w_out + 1, 1)
    tap_offsets = tuple(r * wc + c for r in row_offs for c in col_offs)
    m_in = n_rows * wc
    m_acc = (th - 1) * wc + w_out            # last valid flat output index + 1
    res_offset = (wc + 1) if use_res else None

    # ---- per-(batch, row-tile) input windows (small Cin tensor; these are
    #      plain XLA ops that fuse into the surrounding jit) -------------------
    ones = jnp.ones((N, H, W, 1), x.dtype)                     # "valid" channel
    xa = jnp.concatenate([x, ones], axis=-1)
    xa = jnp.pad(xa, ((0, 0), (1, stride), (1, 1), (0, cin_pad - inp - 1)))

    t_idx = np.arange(n_t)[:, None]
    r_idx = np.arange(n_rows)[None, :]
    if stride == 1:
        rows = t_idx * th + r_idx
    else:
        local = np.where(r_idx <= th, 2 * r_idx, 2 * (r_idx - (th + 1)) + 1)
        rows = 2 * t_idx * th + local
    xt = xa[:, rows]                                           # (N, nT, R, W+2, cin_pad)
    if stride == 2:
        cols = np.concatenate([np.arange(0, wc, 2), np.arange(1, wc, 2)])
        xt = xt[:, :, :, cols, :]
    xt = xt.reshape(N, n_t, m_in, cin_pad)

    w1a, wdw9, b2p, w2p, b3p = _prepare_weights(
        params, inp, hidden, oup, has_expand, cin_pad, ch_pad, co_pad, x.dtype)

    kernel = functools.partial(_fused_kernel, tap_offsets, m_acc, res_offset,
                               has_expand, ch_pad, co_pad)

    inputs = [xt]
    in_specs = [pl.BlockSpec((None, None, m_in, cin_pad),
                             lambda n, t: (n, t, 0, 0))]
    if has_expand:
        inputs.append(w1a)
        in_specs.append(pl.BlockSpec((cin_pad, ch_pad), lambda n, t: (0, 0)))
    inputs += [wdw9, b2p, w2p, b3p]
    in_specs += [
        pl.BlockSpec((9, ch_pad), lambda n, t: (0, 0)),
        pl.BlockSpec((1, ch_pad), lambda n, t: (0, 0)),
        pl.BlockSpec((ch_pad, co_pad), lambda n, t: (0, 0)),
        pl.BlockSpec((1, co_pad), lambda n, t: (0, 0)),
    ]

    vmem_limit = _vmem_limit_bytes(m_in, m_acc, cin_pad, ch_pad, co_pad,
                                   jnp.dtype(x.dtype).itemsize, has_expand)

    out = pl.pallas_call(
        kernel,
        out_shape=jax.ShapeDtypeStruct((N, n_t, m_acc, co_pad), x.dtype),
        grid=(N, n_t),
        in_specs=in_specs,
        out_specs=pl.BlockSpec((None, None, m_acc, co_pad),
                               lambda n, t: (n, t, 0, 0)),
        scratch_shapes=[pltpu.VMEM((m_in, ch_pad), jnp.float32)],
        compiler_params=pltpu.CompilerParams(
            dimension_semantics=("parallel", "parallel"),
            vmem_limit_bytes=vmem_limit),
    )(*inputs)

    # Strip lane padding / the window's extra columns, back to NCHW.
    out = jnp.pad(out, ((0, 0), (0, 0), (0, th * wc - m_acc), (0, 0)))
    out = out.reshape(N, n_t, th, wc, co_pad)[:, :, :, :w_out, :oup]
    out = out.reshape(N, h_out, w_out, oup)
    return jnp.transpose(out, (0, 3, 1, 2))


# --------------------------- deterministic param init ------------------------


def _make_bn(key, c):
    k1, k2, k3, k4 = jax.random.split(key, 4)
    return {
        "gamma": jax.random.uniform(k1, (c,), jnp.float32, 0.8, 1.2),
        "beta": 0.1 * jax.random.normal(k2, (c,), jnp.float32),
        "mean": 0.1 * jax.random.normal(k3, (c,), jnp.float32),
        "var": jax.random.uniform(k4, (c,), jnp.float32, 0.5, 1.5),
    }


def init_params(key, inp, oup, expand_ratio):
    hidden = int(round(inp * expand_ratio))
    ks = jax.random.split(key, 6)
    params = {}
    if expand_ratio != 1:
        params["w_expand"] = 0.2 * jax.random.normal(
            ks[0], (inp, hidden), jnp.float32)
        params["bn1"] = _make_bn(ks[1], hidden)
    params["w_dw"] = 0.2 * jax.random.normal(ks[2], (3, 3, hidden), jnp.float32)
    params["bn2"] = _make_bn(ks[3], hidden)
    params["w_proj"] = 0.2 * jax.random.normal(ks[4], (hidden, oup), jnp.float32)
    params["bn3"] = _make_bn(ks[5], oup)
    return params


# --------------------------------- pure-JAX ref -------------------------------


def reference(params, x_nchw, *, stride, inp, oup, expand_ratio):
    hidden = int(round(inp * expand_ratio))
    use_res = (stride == 1 and inp == oup)

    def conv_bn(x, w_oihw, bn, *, relu6, stride=1, pad=0, groups=1):
        y = jax.lax.conv_general_dilated(
            x, w_oihw, window_strides=(stride, stride),
            padding=[(pad, pad), (pad, pad)],
            feature_group_count=groups,
            dimension_numbers=("NCHW", "OIHW", "NCHW"))
        scale, bias = fold_bn(bn)
        y = y * scale[None, :, None, None] + bias[None, :, None, None]
        if relu6:
            y = jnp.clip(y, 0.0, 6.0)
        return y

    h = x_nchw
    if expand_ratio != 1:
        w1 = params["w_expand"].T.reshape(hidden, inp, 1, 1)
        h = conv_bn(h, w1, params["bn1"], relu6=True)
    wdw = jnp.transpose(params["w_dw"], (2, 0, 1))[:, None, :, :]
    h = conv_bn(h, wdw, params["bn2"], relu6=True, stride=stride, pad=1,
                groups=hidden)
    w2 = params["w_proj"].T.reshape(oup, hidden, 1, 1)
    h = conv_bn(h, w2, params["bn3"], relu6=False)
    return x_nchw + h if use_res else h


# ------------------------------------ main ------------------------------------

if __name__ == "__main__":
    key = jax.random.PRNGKey(0)
    k_x, k_p1, k_p2, k_p3 = jax.random.split(key, 4)

    x = jax.random.normal(k_x, (2, 4, 16, 16), jnp.float32)  # NCHW like PyTorch

    # Case 1: stride=1, inp==oup -> residual; 2 row tiles exercise the halo.
    inp, oup, stride, er = 4, 4, 1, 6
    params = init_params(k_p1, inp, oup, er)
    fwd = jax.jit(functools.partial(inverted_residual, stride=stride, inp=inp,
                                    oup=oup, expand_ratio=er, row_tile=8))
    out = jax.block_until_ready(fwd(params, x))
    ref = reference(params, x, stride=stride, inp=inp, oup=oup, expand_ratio=er)
    assert out.shape == (2, 4, 16, 16)
    assert jnp.allclose(out, ref, atol=1e-4, rtol=1e-4), "stride=1 mismatch"

    # Case 2: stride=2, inp!=oup -> no residual; strided outputs are computed
    # directly in-kernel (2 row tiles exercise the stride-2 halo).
    inp2, oup2, stride2, er2 = 4, 8, 2, 6
    params2 = init_params(k_p2, inp2, oup2, er2)
    fwd2 = jax.jit(functools.partial(inverted_residual, stride=stride2,
                                     inp=inp2, oup=oup2, expand_ratio=er2,
                                     row_tile=4))
    out2 = jax.block_until_ready(fwd2(params2, x))
    ref2 = reference(params2, x, stride=stride2, inp=inp2, oup=oup2,
                     expand_ratio=er2)
    assert out2.shape == (2, 8, 8, 8)
    assert jnp.allclose(out2, ref2, atol=1e-4, rtol=1e-4), "stride=2 mismatch"

    # Case 3: expand_ratio=1 (MobileNetV2's first bottleneck flavour).
    inp3, oup3, stride3, er3 = 8, 4, 1, 1
    x3 = jax.random.normal(k_x, (2, 8, 16, 16), jnp.float32)
    params3 = init_params(k_p3, inp3, oup3, er3)
    fwd3 = jax.jit(functools.partial(inverted_residual, stride=stride3,
                                     inp=inp3, oup=oup3, expand_ratio=er3))
    out3 = jax.block_until_ready(fwd3(params3, x3))
    ref3 = reference(params3, x3, stride=stride3, inp=inp3, oup=oup3,
                     expand_ratio=er3)
    assert out3.shape == (2, 4, 16, 16)
    assert jnp.allclose(out3, ref3, atol=1e-4, rtol=1e-4), "expand=1 mismatch"

    print("KERNEL_OK")
</pallas_src>

<mosaic_0001>
module attributes {stable_mosaic.version = 11 : i64} {
  func.func @_fused_kernel(%arg0: i32, %arg1: i32, %arg2: memref<1x1x180x128xf32, #tpu.memory_space<vmem>>, %arg3: memref<128x128xf32, #tpu.memory_space<vmem>>, %arg4: memref<9x128xf32, #tpu.memory_space<vmem>>, %arg5: memref<1x128xf32, #tpu.memory_space<vmem>>, %arg6: memref<128x128xf32, #tpu.memory_space<vmem>>, %arg7: memref<1x128xf32, #tpu.memory_space<vmem>>, %arg8: memref<1x1x142x128xf32, #tpu.memory_space<vmem>>, %arg9: memref<180x128xf32, #tpu.memory_space<vmem>>) attributes {dimension_semantics = [#tpu.dimension_semantics<parallel>, #tpu.dimension_semantics<parallel>], iteration_bounds = array<i64: 2, 2>, scalar_prefetch = 0 : i64, scratch_operands = 1 : i64, tpu.core_type = #tpu.core_type<tc>, window_params = [{transform_indices = @transform_0, window_bounds = array<i64: 1, 1, 180, 128>}, {pipeline_mode = #tpu.pipeline_mode<synchronous>, transform_indices = @transform_1, window_bounds = array<i64: 128, 128>}, {pipeline_mode = #tpu.pipeline_mode<synchronous>, transform_indices = @transform_2, window_bounds = array<i64: 9, 128>}, {pipeline_mode = #tpu.pipeline_mode<synchronous>, transform_indices = @transform_3, window_bounds = array<i64: 1, 128>}, {pipeline_mode = #tpu.pipeline_mode<synchronous>, transform_indices = @transform_4, window_bounds = array<i64: 128, 128>}, {pipeline_mode = #tpu.pipeline_mode<synchronous>, transform_indices = @transform_5, window_bounds = array<i64: 1, 128>}, {transform_indices = @transform_6, window_bounds = array<i64: 1, 1, 142, 128>}]} {
    %c0 = arith.constant 0 : index
    %c0_0 = arith.constant 0 : index
    %c0_1 = arith.constant 0 : index
    %c0_2 = arith.constant 0 : index
    %0 = vector.load %arg2[%c0, %c0_0, %c0_1, %c0_2] : memref<1x1x180x128xf32, #tpu.memory_space<vmem>>, vector<1x1x180x128xf32>
    %1 = vector.shape_cast %0 : vector<1x1x180x128xf32> to vector<180x128xf32>
    %c0_3 = arith.constant 0 : index
    %c0_4 = arith.constant 0 : index
    %2 = vector.load %arg3[%c0_3, %c0_4] : memref<128x128xf32, #tpu.memory_space<vmem>>, vector<128x128xf32>
    %cst = arith.constant dense<0.000000e+00> : vector<180x128xf32>
    %3 = tpu.matmul %1, %2, %cst {dimension_numbers = #tpu.dot_dimension_numbers<[1], [0], [0], [1], [0, 0, 1, 1], [], []>} : vector<180x128xf32>, vector<128x128xf32>, vector<180x128xf32> -> vector<180x128xf32>
    %cst_5 = arith.constant 0.000000e+00 : f32
    %cst_6 = arith.constant 6.000000e+00 : f32
    %4 = vector.broadcast %cst_5 : f32 to vector<180x128xf32>
    %5 = arith.maximumf %4, %3 : vector<180x128xf32>
    %6 = vector.broadcast %cst_6 : f32 to vector<180x128xf32>
    %7 = arith.minimumf %6, %5 : vector<180x128xf32>
    %c0_7 = arith.constant 0 : index
    %c0_8 = arith.constant 0 : index
    %8 = vector.load %arg9[%c0_7, %c0_8] : memref<180x128xf32, #tpu.memory_space<vmem>>, vector<180x128xf32>
    tpu.vector_store %arg9[%c0_7, %c0_8], %7 {strides = array<i32>} : memref<180x128xf32, #tpu.memory_space<vmem>>, vector<180x128xf32>,
    %c0_9 = arith.constant 0 : index
    %c0_10 = arith.constant 0 : index
    %9 = vector.load %arg4[%c0_9, %c0_10] : memref<9x128xf32, #tpu.memory_space<vmem>>, vector<9x128xf32>
    %c0_11 = arith.constant 0 : index
    %c0_12 = arith.constant 0 : index
    %10 = vector.load %arg9[%c0_11, %c0_12] : memref<180x128xf32, #tpu.memory_space<vmem>>, vector<142x128xf32>
    %11 = vector.extract_strided_slice %9 {offsets = [0, 0], sizes = [1, 128], strides = [1, 1]} : vector<9x128xf32> to vector<1x128xf32>
    %12 = vector.broadcast %11 : vector<1x128xf32> to vector<142x128xf32>
    %13 = arith.mulf %10, %12 : vector<142x128xf32>
    %c1 = arith.constant 1 : index
    %c0_13 = arith.constant 0 : index
    %14 = vector.load %arg9[%c1, %c0_13] : memref<180x128xf32, #tpu.memory_space<vmem>>, vector<142x128xf32>
    %15 = vector.extract_strided_slice %9 {offsets = [1, 0], sizes = [1, 128], strides = [1, 1]} : vector<9x128xf32> to vector<1x128xf32>
    %16 = vector.broadcast %15 : vector<1x128xf32> to vector<142x128xf32>
    %17 = arith.mulf %14, %16 : vector<142x128xf32>
    %18 = arith.addf %13, %17 : vector<142x128xf32>
    %c2 = arith.constant 2 : index
    %c0_14 = arith.constant 0 : index
    %19 = vector.load %arg9[%c2, %c0_14] : memref<180x128xf32, #tpu.memory_space<vmem>>, vector<142x128xf32>
    %20 = vector.extract_strided_slice %9 {offsets = [2, 0], sizes = [1, 128], strides = [1, 1]} : vector<9x128xf32> to vector<1x128xf32>
    %21 = vector.broadcast %20 : vector<1x128xf32> to vector<142x128xf32>
    %22 = arith.mulf %19, %21 : vector<142x128xf32>
    %23 = arith.addf %18, %22 : vector<142x128xf32>
    %c18 = arith.constant 18 : index
    %c0_15 = arith.constant 0 : index
    %24 = vector.load %arg9[%c18, %c0_15] : memref<180x128xf32, #tpu.memory_space<vmem>>, vector<142x128xf32>
    %25 = vector.extract_strided_slice %9 {offsets = [3, 0], sizes = [1, 128], strides = [1, 1]} : vector<9x128xf32> to vector<1x128xf32>
    %26 = vector.broadcast %25 : vector<1x128xf32> to vector<142x128xf32>
    %27 = arith.mulf %24, %26 : vector<142x128xf32>
    %28 = arith.addf %23, %27 : vector<142x128xf32>
    %c19 = arith.constant 19 : index
    %c0_16 = arith.constant 0 : index
    %29 = vector.load %arg9[%c19, %c0_16] : memref<180x128xf32, #tpu.memory_space<vmem>>, vector<142x128xf32>
    %30 = vector.extract_strided_slice %9 {offsets = [4, 0], sizes = [1, 128], strides = [1, 1]} : vector<9x128xf32> to vector<1x128xf32>
    %31 = vector.broadcast %30 : vector<1x128xf32> to vector<142x128xf32>
    %32 = arith.mulf %29, %31 : vector<142x128xf32>
    %33 = arith.addf %28, %32 : vector<142x128xf32>
    %c20 = arith.constant 20 : index
    %c0_17 = arith.constant 0 : index
    %34 = vector.load %arg9[%c20, %c0_17] : memref<180x128xf32, #tpu.memory_space<vmem>>, vector<142x128xf32>
    %35 = vector.extract_strided_slice %9 {offsets = [5, 0], sizes = [1, 128], strides = [1, 1]} : vector<9x128xf32> to vector<1x128xf32>
    %36 = vector.broadcast %35 : vector<1x128xf32> to vector<142x128xf32>
    %37 = arith.mulf %34, %36 : vector<142x128xf32>
    %38 = arith.addf %33, %37 : vector<142x128xf32>
    %c36 = arith.constant 36 : index
    %c0_18 = arith.constant 0 : index
    %39 = vector.load %arg9[%c36, %c0_18] : memref<180x128xf32, #tpu.memory_space<vmem>>, vector<142x128xf32>
    %40 = vector.extract_strided_slice %9 {offsets = [6, 0], sizes = [1, 128], strides = [1, 1]} : vector<9x128xf32> to vector<1x128xf32>
    %41 = vector.broadcast %40 : vector<1x128xf32> to vector<142x128xf32>
    %42 = arith.mulf %39, %41 : vector<142x128xf32>
    %43 = arith.addf %38, %42 : vector<142x128xf32>
    %c37 = arith.constant 37 : index
    %c0_19 = arith.constant 0 : index
    %44 = vector.load %arg9[%c37, %c0_19] : memref<180x128xf32, #tpu.memory_space<vmem>>, vector<142x128xf32>
    %45 = vector.extract_strided_slice %9 {offsets = [7, 0], sizes = [1, 128], strides = [1, 1]} : vector<9x128xf32> to vector<1x128xf32>
    %46 = vector.broadcast %45 : vector<1x128xf32> to vector<142x128xf32>
    %47 = arith.mulf %44, %46 : vector<142x128xf32>
    %48 = arith.addf %43, %47 : vector<142x128xf32>
    %c38 = arith.constant 38 : index
    %c0_20 = arith.constant 0 : index
    %49 = vector.load %arg9[%c38, %c0_20] : memref<180x128xf32, #tpu.memory_space<vmem>>, vector<142x128xf32>
    %50 = vector.extract_strided_slice %9 {offsets = [8, 0], sizes = [1, 128], strides = [1, 1]} : vector<9x128xf32> to vector<1x128xf32>
    %51 = vector.broadcast %50 : vector<1x128xf32> to vector<142x128xf32>
    %52 = arith.mulf %49, %51 : vector<142x128xf32>
    %53 = arith.addf %48, %52 : vector<142x128xf32>
    %c0_21 = arith.constant 0 : index
    %c0_22 = arith.constant 0 : index
    %54 = vector.load %arg5[%c0_21, %c0_22] : memref<1x128xf32, #tpu.memory_space<vmem>>, vector<1x128xf32>
    %55 = vector.broadcast %54 : vector<1x128xf32> to vector<142x128xf32>
    %56 = arith.addf %53, %55 : vector<142x128xf32>
    %cst_23 = arith.constant 0.000000e+00 : f32
    %cst_24 = arith.constant 6.000000e+00 : f32
    %57 = vector.broadcast %cst_23 : f32 to vector<142x128xf32>
    %58 = arith.maximumf %57, %56 : vector<142x128xf32>
    %59 = vector.broadcast %cst_24 : f32 to vector<142x128xf32>
    %60 = arith.minimumf %59, %58 : vector<142x128xf32>
    %c0_25 = arith.constant 0 : index
    %c0_26 = arith.constant 0 : index
    %61 = vector.load %arg6[%c0_25, %c0_26] : memref<128x128xf32, #tpu.memory_space<vmem>>, vector<128x128xf32>
    %cst_27 = arith.constant dense<0.000000e+00> : vector<142x128xf32>
    %62 = tpu.matmul %60, %61, %cst_27 {dimension_numbers = #tpu.dot_dimension_numbers<[1], [0], [0], [1], [0, 0, 1, 1], [], []>} : vector<142x128xf32>, vector<128x128xf32>, vector<142x128xf32> -> vector<142x128xf32>
    %c0_28 = arith.constant 0 : index
    %c0_29 = arith.constant 0 : index
    %63 = vector.load %arg7[%c0_28, %c0_29] : memref<1x128xf32, #tpu.memory_space<vmem>>, vector<1x128xf32>
    %64 = vector.broadcast %63 : vector<1x128xf32> to vector<142x128xf32>
    %65 = arith.addf %62, %64 : vector<142x128xf32>
    %c0_30 = arith.constant 0 : index
    %c0_31 = arith.constant 0 : index
    %c19_32 = arith.constant 19 : index
    %c0_33 = arith.constant 0 : index
    %66 = vector.load %arg2[%c0_30, %c0_31, %c19_32, %c0_33] : memref<1x1x180x128xf32, #tpu.memory_space<vmem>>, vector<1x1x142x128xf32>
    %67 = vector.shape_cast %66 : vector<1x1x142x128xf32> to vector<142x128xf32>
    %68 = arith.addf %65, %67 : vector<142x128xf32>
    %c0_34 = arith.constant 0 : index
    %c0_35 = arith.constant 0 : index
    %c0_36 = arith.constant 0 : index
    %c0_37 = arith.constant 0 : index
    %69 = vector.load %arg8[%c0_34, %c0_35, %c0_36, %c0_37] : memref<1x1x142x128xf32, #tpu.memory_space<vmem>>, vector<1x1x142x128xf32>
    %70 = vector.shape_cast %69 : vector<1x1x142x128xf32> to vector<142x128xf32>
    %71 = vector.shape_cast %68 : vector<142x128xf32> to vector<1x1x142x128xf32>
    tpu.vector_store %arg8[%c0_34, %c0_35, %c0_36, %c0_37], %71 {strides = array<i32>} : memref<1x1x142x128xf32, #tpu.memory_space<vmem>>, vector<1x1x142x128xf32>,
    return
  }
  func.func @transform_0(%arg0: i32, %arg1: i32) -> (i32, i32, i32, i32) {
    %c0_i32 = arith.constant 0 : i32
    %c0_i32_0 = arith.constant 0 : i32
    %c0_i32_1 = arith.constant 0 : i32
    return %arg0, %arg1, %c0_i32, %c0_i32_0 : i32, i32, i32, i32
  }
  func.func @transform_1(%arg0: i32, %arg1: i32) -> (i32, i32) {
    %c0_i32 = arith.constant 0 : i32
    %c0_i32_0 = arith.constant 0 : i32
    %c0_i32_1 = arith.constant 0 : i32
    return %c0_i32, %c0_i32_0 : i32, i32
  }
  func.func @transform_2(%arg0: i32, %arg1: i32) -> (i32, i32) {
    %c0_i32 = arith.constant 0 : i32
    %c0_i32_0 = arith.constant 0 : i32
    %c0_i32_1 = arith.constant 0 : i32
    return %c0_i32, %c0_i32_0 : i32, i32
  }
  func.func @transform_3(%arg0: i32, %arg1: i32) -> (i32, i32) {
    %c0_i32 = arith.constant 0 : i32
    %c0_i32_0 = arith.constant 0 : i32
    %c0_i32_1 = arith.constant 0 : i32
    return %c0_i32, %c0_i32_0 : i32, i32
  }
  func.func @transform_4(%arg0: i32, %arg1: i32) -> (i32, i32) {
    %c0_i32 = arith.constant 0 : i32
    %c0_i32_0 = arith.constant 0 : i32
    %c0_i32_1 = arith.constant 0 : i32
    return %c0_i32, %c0_i32_0 : i32, i32
  }
  func.func @transform_5(%arg0: i32, %arg1: i32) -> (i32, i32) {
    %c0_i32 = arith.constant 0 : i32
    %c0_i32_0 = arith.constant 0 : i32
    %c0_i32_1 = arith.constant 0 : i32
    return %c0_i32, %c0_i32_0 : i32, i32
  }
  func.func @transform_6(%arg0: i32, %arg1: i32) -> (i32, i32, i32, i32) {
    %c0_i32 = arith.constant 0 : i32
    %c0_i32_0 = arith.constant 0 : i32
    %c0_i32_1 = arith.constant 0 : i32
    return %arg0, %arg1, %c0_i32, %c0_i32_0 : i32, i32, i32, i32
  }
}

</mosaic_0001>

<llo_original>
// kernel: inverted_residual.1
$region0: #{inverted_residual.1}
  #allocation0 [shape = 'u32[]', space=smem, size = 0x4, offset = 0x4, fixed_abs, tag = 'smem constant byte address 0x4 - core index']
  #allocation1 [shape = 'u32[144,128]{1,0:T(1,128)}', space=vmem, size = 0x12000, scoped, tag = 'internal scratch']
  #allocation2 [shape = 'f32[180,128]{1,0:T(8,128)}', space=vmem, size = 0x17000, scoped, tag = 'scratch operand']
  %s0 = inlined_call_operand.vmem [shape: f32[2,2,180,128], index: 0, kind: input, shape index: {}]
  %s1 = inlined_call_operand.vmem [shape: f32[128,128], index: 1, kind: input, shape index: {}]
  %s2 = inlined_call_operand.vmem [shape: f32[9,128], index: 2, kind: input, shape index: {}]
  %s3 = inlined_call_operand.vmem [shape: f32[1,128], index: 3, kind: input, shape index: {}]
  %s4 = inlined_call_operand.vmem [shape: f32[128,128], index: 4, kind: input, shape index: {}]
  %s5 = inlined_call_operand.vmem [shape: f32[1,128], index: 5, kind: input, shape index: {}]
  %s6 = inlined_call_operand.vmem [shape: f32[2,2,142,128], index: 6, kind: output, shape index: {}]
  %s7 = sld [smem:[#allocation0]]
  $region57: #{inverted_residual.1} parent=0
    _
  %s9 = ssub.s32 1, %s7
  %s10 = scalar_select 0, %s9, %s7
  loop: start=0, step=1, limit=6
  $region2: #{inverted_residual.1} parent=0 // loop_pre_header
    _
  $region3: #{inverted_residual.1} parent=0 // loop_header
    %s12 = sphi 0, %s16
    %p13 = scmp.ge.s32.totalorder %s12, 6
    %s19 = sphi 0, %s31
    %s20 = sphi 0, %s27
    %s21 = sphi 0, %s19
    %s22 = sphi 0, %s20
    %s23 = sphi 0, %s21
    %s24 = sphi 0, %s22
    %s36 = sphi 0, %s38
    %s39 = sphi 0, %s36
    %s40 = sphi 0, %s39
    %s56 = sphi 0, %s40
    %s60 = sphi 0, %s60
    %s62 = sphi 0, %s60
    %s63 = sphi 0, %s62
    %s77 = sphi 0, %s63
    %s81 = sphi 0, %s81
    %s83 = sphi 0, %s81
    %s84 = sphi 0, %s83
    %s98 = sphi 0, %s84
    %s102 = sphi 0, %s102
    %s104 = sphi 0, %s102
    %s105 = sphi 0, %s104
    %s119 = sphi 0, %s105
    %s123 = sphi 0, %s123
    %s125 = sphi 0, %s123
    %s126 = sphi 0, %s125
    %s140 = sphi 0, %s126
    %s144 = sphi 0, %s144
    %s146 = sphi 0, %s144
    %s147 = sphi 0, %s146
    %s161 = sphi 0, %s147
    %s169 = sphi 0, %s171
    %s172 = sphi 0, %s169
    %s173 = sphi 0, %s172
    %s189 = sphi 0, %s173
  $region4: #{inverted_residual.1} parent=0 // loop_header_branch
    %15 = sbr.rel (%p13) target = $region8
  $region5: #{inverted_residual.1} parent=0 // loop_body
    %s17 = ssub.s32 %s12, 1
    %s18 = ssub.s32 %s12, 2
    %s25 = sadd.s32 1, %s20
    %p26 = scmp.ge.s32.totalorder %s25, 2
    %s27 = scalar_select %p26, 0, %s25
    %s28 = sadd.s32 1, %s19
    %s29 = scalar_select %p26, %s28, %s19
    %p30 = scmp.ge.s32.totalorder %s29, 2
    %s31 = scalar_select %p30, 0, %s29
    %s32 = ssub.s32 %s19, %s31
    %s33 = ssub.s32 %s20, %s27
    %s34 = sor.u32 %s32, %s33
    %p35 = scmp.eq.s32.totalorder %s34, 0
    %s37 = sadd.s32 %s36, 1
    %s38 = scalar_select %p35, %s36, %s37
    %p41 = pneg %p35
    %p42 = scmp.eq.s32.totalorder %s12, 3
    %p43 = por %p41, %p42
    %p44 = scmp.ne.s32.totalorder %s36, %s39
    %p45 = scmp.eq.s32.totalorder %s12, 0
    %p46 = por %p44, %p45
    %p47 = scmp.ne.s32.totalorder %s36, %s39
    %p48 = scmp.eq.s32.totalorder %s17, 3
    %p49 = por %p47, %p48
    %p50 = scmp.ne.s32.totalorder %s39, %s40
    %p51 = scmp.eq.s32.totalorder %s17, 0
    %p52 = por %p50, %p51
    %p53 = scmp.ne.s32.totalorder %s39, %s40
    %p54 = scmp.eq.s32.totalorder %s18, 3
    %p55 = por %p53, %p54
    %p57 = scmp.ne.s32.totalorder %s40, %s56
    %p58 = scmp.eq.s32.totalorder %s18, 0
    %p59 = por %p57, %p58
    %s61 = sadd.s32 %s60, 1
    %p64 = scmp.eq.s32.totalorder %s12, 3
    %p65 = scmp.ne.s32.totalorder %s60, %s62
    %p66 = scmp.eq.s32.totalorder %s12, 0
    %p67 = por %p65, %p66
    %p68 = scmp.ne.s32.totalorder %s60, %s62
    %p69 = scmp.eq.s32.totalorder %s17, 3
    %p70 = por %p68, %p69
    %p71 = scmp.ne.s32.totalorder %s62, %s63
    %p72 = scmp.eq.s32.totalorder %s17, 0
    %p73 = por %p71, %p72
    %p74 = scmp.ne.s32.totalorder %s62, %s63
    %p75 = scmp.eq.s32.totalorder %s18, 3
    %p76 = por %p74, %p75
    %p78 = scmp.ne.s32.totalorder %s63, %s77
    %p79 = scmp.eq.s32.totalorder %s18, 0
    %p80 = por %p78, %p79
    %s82 = sadd.s32 %s81, 1
    %p85 = scmp.eq.s32.totalorder %s12, 3
    %p86 = scmp.ne.s32.totalorder %s81, %s83
    %p87 = scmp.eq.s32.totalorder %s12, 0
    %p88 = por %p86, %p87
    %p89 = scmp.ne.s32.totalorder %s81, %s83
    %p90 = scmp.eq.s32.totalorder %s17, 3
    %p91 = por %p89, %p90
    %p92 = scmp.ne.s32.totalorder %s83, %s84
    %p93 = scmp.eq.s32.totalorder %s17, 0
    %p94 = por %p92, %p93
    %p95 = scmp.ne.s32.totalorder %s83, %s84
    %p96 = scmp.eq.s32.totalorder %s18, 3
    %p97 = por %p95, %p96
    %p99 = scmp.ne.s32.totalorder %s84, %s98
    %p100 = scmp.eq.s32.totalorder %s18, 0
    %p101 = por %p99, %p100
    %s103 = sadd.s32 %s102, 1
    %p106 = scmp.eq.s32.totalorder %s12, 3
    %p107 = scmp.ne.s32.totalorder %s102, %s104
    %p108 = scmp.eq.s32.totalorder %s12, 0
    %p109 = por %p107, %p108
    %p110 = scmp.ne.s32.totalorder %s102, %s104
    %p111 = scmp.eq.s32.totalorder %s17, 3
    %p112 = por %p110, %p111
    %p113 = scmp.ne.s32.totalorder %s104, %s105
    %p114 = scmp.eq.s32.totalorder %s17, 0
    %p115 = por %p113, %p114
    %p116 = scmp.ne.s32.totalorder %s104, %s105
    %p117 = scmp.eq.s32.totalorder %s18, 3
    %p118 = por %p116, %p117
    %p120 = scmp.ne.s32.totalorder %s105, %s119
    %p121 = scmp.eq.s32.totalorder %s18, 0
    %p122 = por %p120, %p121
    %s124 = sadd.s32 %s123, 1
    %p127 = scmp.eq.s32.totalorder %s12, 3
    %p128 = scmp.ne.s32.totalorder %s123, %s125
    %p129 = scmp.eq.s32.totalorder %s12, 0
    %p130 = por %p128, %p129
    %p131 = scmp.ne.s32.totalorder %s123, %s125
    %p132 = scmp.eq.s32.totalorder %s17, 3
    %p133 = por %p131, %p132
    %p134 = scmp.ne.s32.totalorder %s125, %s126
    %p135 = scmp.eq.s32.totalorder %s17, 0
    %p136 = por %p134, %p135
    %p137 = scmp.ne.s32.totalorder %s125, %s126
    %p138 = scmp.eq.s32.totalorder %s18, 3
    %p139 = por %p137, %p138
    %p141 = scmp.ne.s32.totalorder %s126, %s140
    %p142 = scmp.eq.s32.totalorder %s18, 0
    %p143 = por %p141, %p142
    %s145 = sadd.s32 %s144, 1
    %p148 = scmp.eq.s32.totalorder %s12, 3
    %p149 = scmp.ne.s32.totalorder %s144, %s146
    %p150 = scmp.eq.s32.totalorder %s12, 0
    %p151 = por %p149, %p150
    %p152 = scmp.ne.s32.totalorder %s144, %s146
    %p153 = scmp.eq.s32.totalorder %s17, 3
    %p154 = por %p152, %p153
    %p155 = scmp.ne.s32.totalorder %s146, %s147
    %p156 = scmp.eq.s32.totalorder %s17, 0
    %p157 = por %p155, %p156
    %p158 = scmp.ne.s32.totalorder %s146, %s147
    %p159 = scmp.eq.s32.totalorder %s18, 3
    %p160 = por %p158, %p159
    %p162 = scmp.ne.s32.totalorder %s147, %s161
    %p163 = scmp.eq.s32.totalorder %s18, 0
    %p164 = por %p162, %p163
    %s165 = ssub.s32 %s19, %s31
    %s166 = ssub.s32 %s20, %s27
    %s167 = sor.u32 %s165, %s166
    %p168 = scmp.eq.s32.totalorder %s167, 0
    %s170 = sadd.s32 %s169, 1
    %s171 = scalar_select %p168, %s169, %s170
    %p174 = pneg %p168
    %p175 = scmp.eq.s32.totalorder %s12, 3
    %p176 = por %p174, %p175
    %p177 = scmp.ne.s32.totalorder %s169, %s172
    %p178 = scmp.eq.s32.totalorder %s12, 0
    %p179 = por %p177, %p178
    %p180 = scmp.ne.s32.totalorder %s169, %s172
    %p181 = scmp.eq.s32.totalorder %s17, 3
    %p182 = por %p180, %p181
    %p183 = scmp.ne.s32.totalorder %s172, %s173
    %p184 = scmp.eq.s32.totalorder %s17, 0
    %p185 = por %p183, %p184
    %p186 = scmp.ne.s32.totalorder %s172, %s173
    %p187 = scmp.eq.s32.totalorder %s18, 3
    %p188 = por %p186, %p187
    %p190 = scmp.ne.s32.totalorder %s173, %s189
    %p191 = scmp.eq.s32.totalorder %s18, 0
    %p192 = por %p190, %p191
    %p193 = scmp.le.s32.totalorder 1, %s12
    %p194 = scmp.lt.s32.totalorder %s12, 5
    %p195 = pnand %p193, %p194
    %p196 = pneg %p195
    // Predicated region
    $region9: #{inverted_residual.1} parent=5 // pred_check
      _
    $region10: #{inverted_residual.1} parent=5 // pred_check_branch
      %198 = sbr.rel (%p195) target = $region12
    $region11: #{inverted_residual.1} parent=5 // pred_region
      %s199 = ssub.s32 %s12, 1
      // Predicated region
      $region13: #{inverted_residual.1} parent=11 // pred_check
        %p200 = pneg %p73
      $region14: #{inverted_residual.1} parent=11 // pred_check_branch
        %202 = sbr.rel (%p200) target = $region16
      $region15: #{inverted_residual.1} parent=11 // pred_region
        _
      $region16: #{inverted_residual.1} parent=11 // pred_fallthru
        _
      // Predicated region
      $region17: #{inverted_residual.1} parent=11 // pred_check
        %p203 = pneg %p94
      $region18: #{inverted_residual.1} parent=11 // pred_check_branch
        %205 = sbr.rel (%p203) target = $region20
      $region19: #{inverted_residual.1} parent=11 // pred_region
        _
      $region20: #{inverted_residual.1} parent=11 // pred_fallthru
        _
      // Predicated region
      $region21: #{inverted_residual.1} parent=11 // pred_check
        %p206 = pneg %p115
      $region22: #{inverted_residual.1} parent=11 // pred_check_branch
        %208 = sbr.rel (%p206) target = $region24
      $region23: #{inverted_residual.1} parent=11 // pred_region
        _
      $region24: #{inverted_residual.1} parent=11 // pred_fallthru
        _
      // Predicated region
      $region25: #{inverted_residual.1} parent=11 // pred_check
        %p209 = pneg %p136
      $region26: #{inverted_residual.1} parent=11 // pred_check_branch
        %211 = sbr.rel (%p209) target = $region28
      $region27: #{inverted_residual.1} parent=11 // pred_region
        _
      $region28: #{inverted_residual.1} parent=11 // pred_fallthru
        _
      // Predicated region
      $region29: #{inverted_residual.1} parent=11 // pred_check
        %p212 = pneg %p157
      $region30: #{inverted_residual.1} parent=11 // pred_check_branch
        %214 = sbr.rel (%p212) target = $region32
      $region31: #{inverted_residual.1} parent=11 // pred_region
        _
      $region32: #{inverted_residual.1} parent=11 // pred_fallthru
        _
    $region12: #{inverted_residual.1} parent=5 // pred_fallthru
      _
    %p215 = scmp.lt.s32.totalorder %s12, 4
    // Predicated region
    $region33: #{inverted_residual.1} parent=5 // pred_check
      %p216 = pneg %p215
    $region34: #{inverted_residual.1} parent=5 // pred_check_branch
      %218 = sbr.rel (%p216) target = $region36
    $region35: #{inverted_residual.1} parent=5 // pred_region
      // Predicated region
      $region37: #{inverted_residual.1} parent=35 // pred_check
        %p219 = pneg %p46
      $region38: #{inverted_residual.1} parent=35 // pred_check_branch
        %221 = sbr.rel (%p219) target = $region40
      $region39: #{inverted_residual.1} parent=35 // pred_region
        %p222 = scmp.lt.s32.totalorder %s19, 1
        %s223 = scalar_select %p222, %s19, 1
        %p224 = scmp.lt.s32.totalorder %s20, 1
        %s225 = scalar_select %p224, %s20, 1
        %s226 = smul.addr %s225, 23
        %s227 = smul.addr %s223, 46
        %s228 = sadd.s32 %s226, %s227
        %s229 = smul.addr %s228, 8
        %s230 = scalar_lea.vmem %s0, %s229
      $region40: #{inverted_residual.1} parent=35 // pred_fallthru
        _
    $region36: #{inverted_residual.1} parent=5 // pred_fallthru
      _
    %p231 = scmp.le.s32.totalorder 1, %s12
    %p232 = scmp.lt.s32.totalorder %s12, 5
    %p233 = pnand %p231, %p232
    %p234 = pneg %p233
    // Predicated region
    $region41: #{inverted_residual.1} parent=5 // pred_check
      _
    $region42: #{inverted_residual.1} parent=5 // pred_check_branch
      %236 = sbr.rel (%p233) target = $region44
    $region43: #{inverted_residual.1} parent=5 // pred_region
      %s237 = ssub.s32 %s12, 1
      %p238 = scmp.lt.s32.totalorder %s21, 1
      %s239 = scalar_select %p238, %s21, 1
      %p240 = scmp.lt.s32.totalorder %s22, 1
      %s241 = scalar_select %p240, %s22, 1
      %s242 = smul.addr %s241, 23
      %s243 = smul.addr %s239, 46
      %s244 = sadd.s32 %s242, %s243
      %s245 = smul.addr %s244, 8
      %s246 = scalar_lea.vmem %s0, %s245
      %p247 = pneg %p52
      %p248 = pneg %p49
      %p249 = pneg %p73
      %p250 = pneg %p70
      %p251 = pneg %p94
      %p252 = pneg %p91
      %p253 = pneg %p115
      %p254 = pneg %p112
      %p255 = pneg %p136
      %p256 = pneg %p133
      %p257 = pneg %p157
      %p258 = pneg %p154
      %p259 = pneg %p185
      %p260 = pneg %p182
      %p261 = scmp.lt.s32.totalorder %s21, 1
      %s262 = scalar_select %p261, %s21, 1
      %p263 = scmp.lt.s32.totalorder %s22, 1
      %s264 = scalar_select %p263, %s22, 1
      %s265 = smul.addr %s264, 18
      %s266 = smul.addr %s262, 36
      %s267 = sadd.s32 %s265, %s266
      %s268 = smul.addr %s267, 8
      %s269 = scalar_lea.vmem %s6, %s268
      %p270 = scmp.lt.s32.totalorder %s21, 1
      %s271 = scalar_select %p270, %s21, 1
      %p272 = scmp.lt.s32.totalorder %s22, 1
      %s273 = scalar_select %p272, %s22, 1
      %s274 = smul.addr %s273, 23
      %s275 = smul.addr %s271, 46
      %s276 = sadd.s32 %s274, %s275
      %s277 = smul.addr %s276, 8
      %s278 = scalar_lea.vmem %s0, %s277
      %p279 = scmp.lt.s32.totalorder %s21, 1
      %s280 = scalar_select %p279, %s21, 1
      %p281 = scmp.lt.s32.totalorder %s22, 1
      %s282 = scalar_select %p281, %s22, 1
      %s283 = smul.addr %s282, 18
      %s284 = smul.addr %s280, 36
      %s285 = sadd.s32 %s283, %s284
      %s286 = smul.addr %s285, 8
      %s287 = scalar_lea.vmem %s6, %s286
      %v288 = vld [vmem:[%s278] sm:$0xff]
      %v289 = vld [vmem:[%s278 + $0x8] sm:$0xff]
      %v290 = vld [vmem:[%s278 + $0x10] sm:$0xff]
      %v291 = vld [vmem:[%s278 + $0x18] sm:$0xff]
      %v292 = vld [vmem:[%s278 + $0x20] sm:$0xff]
      %v293 = vld [vmem:[%s278 + $0x28] sm:$0xff]
      %v294 = vld [vmem:[%s278 + $0x30] sm:$0xff]
      %v295 = vld [vmem:[%s278 + $0x38] sm:$0xff]
      %v296 = vld [vmem:[%s278 + $0x40] sm:$0xff]
      %v297 = vld [vmem:[%s278 + $0x48] sm:$0xff]
      %v298 = vld [vmem:[%s278 + $0x50] sm:$0xff]
      %v299 = vld [vmem:[%s278 + $0x58] sm:$0xff]
      %v300 = vld [vmem:[%s278 + $0x60] sm:$0xff]
      %v301 = vld [vmem:[%s278 + $0x68] sm:$0xff]
      %v302 = vld [vmem:[%s278 + $0x70] sm:$0xff]
      %v303 = vld [vmem:[%s278 + $0x78] sm:$0xff]
      %v304 = vld [vmem:[%s278 + $0x80] sm:$0xff]
      %v305 = vld [vmem:[%s278 + $0x88] sm:$0xff]
      %v306 = vld [vmem:[%s278 + $0x90] sm:$0xff]
      %v307 = vld [vmem:[%s278 + $0x98] sm:$0xff]
      %v308 = vld [vmem:[%s278 + $0xa0] sm:$0xff]
      %v309 = vld [vmem:[%s278 + $0xa8] sm:$0xff]
      %v310 = vld [vmem:[%s278 + $0xb0] sm:$0xf]
      %v311 = vld [vmem:[%s1] sm:$0xff]
      %v312 = vld [vmem:[%s1 + $0x8] sm:$0xff]
      %v313 = vld [vmem:[%s1 + $0x10] sm:$0xff]
      %v314 = vld [vmem:[%s1 + $0x18] sm:$0xff]
      %v315 = vld [vmem:[%s1 + $0x20] sm:$0xff]
      %v316 = vld [vmem:[%s1 + $0x28] sm:$0xff]
      %v317 = vld [vmem:[%s1 + $0x30] sm:$0xff]
      %v318 = vld [vmem:[%s1 + $0x38] sm:$0xff]
      %v319 = vld [vmem:[%s1 + $0x40] sm:$0xff]
      %v320 = vld [vmem:[%s1 + $0x48] sm:$0xff]
      %v321 = vld [vmem:[%s1 + $0x50] sm:$0xff]
      %v322 = vld [vmem:[%s1 + $0x58] sm:$0xff]
      %v323 = vld [vmem:[%s1 + $0x60] sm:$0xff]
      %v324 = vld [vmem:[%s1 + $0x68] sm:$0xff]
      %v325 = vld [vmem:[%s1 + $0x70] sm:$0xff]
      %v326 = vld [vmem:[%s1 + $0x78] sm:$0xff]
      %327 = vmatprep.subr.mxu0 0.0
      %328 = vmatpush1.msra.mxu0 %v326
      %329 = vmatprep.subr.mxu0 0.0
      %330 = vmatpush1.msra.mxu0 %v325
      %331 = vmatprep.subr.mxu0 0.0
      %332 = vmatpush1.msra.mxu0 %v324
      %333 = vmatprep.subr.mxu0 0.0
      %334 = vmatpush1.msra.mxu0 %v323
      %335 = vmatprep.subr.mxu0 0.0
      %336 = vmatpush1.msra.mxu0 %v322
      %337 = vmatprep.subr.mxu0 0.0
      %338 = vmatpush1.msra.mxu0 %v321
      %339 = vmatprep.subr.mxu0 0.0
      %340 = vmatpush1.msra.mxu0 %v320
      %341 = vmatprep.subr.mxu0 0.0
      %342 = vmatpush1.msra.mxu0 %v319
      %343 = vmatprep.subr.mxu0 0.0
      %344 = vmatpush1.msra.mxu0 %v318
      %345 = vmatprep.subr.mxu0 0.0
      %346 = vmatpush1.msra.mxu0 %v317
      %347 = vmatprep.subr.mxu0 0.0
      %348 = vmatpush1.msra.mxu0 %v316
      %349 = vmatprep.subr.mxu0 0.0
      %350 = vmatpush1.msra.mxu0 %v315
      %351 = vmatprep.subr.mxu0 0.0
      %352 = vmatpush1.msra.mxu0 %v314
      %353 = vmatprep.subr.mxu0 0.0
      %354 = vmatpush1.msra.mxu0 %v313
      %355 = vmatprep.subr.mxu0 0.0
      %356 = vmatpush1.msra.mxu0 %v312
      %357 = vmatprep.subr.mxu0 0.0
      %358 = vmatpush1.msra.mxu0 %v311
      %359 = vmatprep.subr.mxu0 0.0
      %360 = vmatpush2.msra.mxu0 0.0
      %361 = vmatprep.subr.mxu0 0.0
      %362 = vmatpush2.msra.mxu0 0.0
      %363 = vmatprep.subr.mxu0 0.0
      %364 = vmatpush2.msra.mxu0 0.0
      %365 = vmatprep.subr.mxu0 0.0
      %366 = vmatpush2.msra.mxu0 0.0
      %367 = vmatprep.subr.mxu0 0.0
      %368 = vmatpush2.msra.mxu0 0.0
      %369 = vmatprep.subr.mxu0 0.0
      %370 = vmatpush2.msra.mxu0 0.0
      %371 = vmatprep.subr.mxu0 0.0
      %372 = vmatpush2.msra.mxu0 0.0
      %373 = vmatprep.subr.mxu0 0.0
      %374 = vmatpush2.msra.mxu0 0.0
      %375 = vmatprep.subr.mxu0 0.0
      %376 = vmatpush2.msra.mxu0 0.0
      %377 = vmatprep.subr.mxu0 0.0
      %378 = vmatpush2.msra.mxu0 0.0
      %379 = vmatprep.subr.mxu0 0.0
      %380 = vmatpush2.msra.mxu0 0.0
      %381 = vmatprep.subr.mxu0 0.0
      %382 = vmatpush2.msra.mxu0 0.0
      %383 = vmatprep.subr.mxu0 0.0
      %384 = vmatpush2.msra.mxu0 0.0
      %385 = vmatprep.subr.mxu0 0.0
      %386 = vmatpush2.msra.mxu0 0.0
      %387 = vmatprep.subr.mxu0 0.0
      %388 = vmatpush2.msra.mxu0 0.0
      %389 = vmatprep.subr.mxu0 0.0
      %390 = vmatpush2.msra.mxu0 0.0
      %391 = vmatprep.mubr.f32.mxu0 0.0
      %392 = vmatmul.mubr.f32.gmra.mxu0 %v288
      %v393 = vpop.f32.mrf.mxu0
      %v394 = vadd.f32 0.0, %v393
      %v395 = vpop.f32.mrf.mxu0
      %396 = vmatprep.mubr.f32.mxu0 0.0
      %397 = vmatmul.mubr.f32.gmra.mxu0 %v289
      %v398 = vpop.f32.mrf.mxu0
      %v399 = vadd.f32 0.0, %v398
      %v400 = vpop.f32.mrf.mxu0
      %401 = vmatprep.mubr.f32.mxu0 0.0
      %402 = vmatmul.mubr.f32.gmra.mxu0 %v290
      %v403 = vpop.f32.mrf.mxu0
      %v404 = vadd.f32 0.0, %v403
      %v405 = vpop.f32.mrf.mxu0
      %406 = vmatprep.mubr.f32.mxu0 0.0
      %407 = vmatmul.mubr.f32.gmra.mxu0 %v291
      %v408 = vpop.f32.mrf.mxu0
      %v409 = vadd.f32 0.0, %v408
      %v410 = vpop.f32.mrf.mxu0
      %411 = vmatprep.mubr.f32.mxu0 0.0
      %412 = vmatmul.mubr.f32.gmra.mxu0 %v292
      %v413 = vpop.f32.mrf.mxu0
      %v414 = vadd.f32 0.0, %v413
      %v415 = vpop.f32.mrf.mxu0
      %416 = vmatprep.mubr.f32.mxu0 0.0
      %417 = vmatmul.mubr.f32.gmra.mxu0 %v293
      %v418 = vpop.f32.mrf.mxu0
      %v419 = vadd.f32 0.0, %v418
      %v420 = vpop.f32.mrf.mxu0
      %421 = vmatprep.mubr.f32.mxu0 0.0
      %422 = vmatmul.mubr.f32.gmra.mxu0 %v294
      %v423 = vpop.f32.mrf.mxu0
      %v424 = vadd.f32 0.0, %v423
      %v425 = vpop.f32.mrf.mxu0
      %426 = vmatprep.mubr.f32.mxu0 0.0
      %427 = vmatmul.mubr.f32.gmra.mxu0 %v295
      %v428 = vpop.f32.mrf.mxu0
      %v429 = vadd.f32 0.0, %v428
      %v430 = vpop.f32.mrf.mxu0
      %431 = vmatprep.mubr.f32.mxu0 0.0
      %432 = vmatmul.mubr.f32.gmra.mxu0 %v296
      %v433 = vpop.f32.mrf.mxu0
      %v434 = vadd.f32 0.0, %v433
      %v435 = vpop.f32.mrf.mxu0
      %436 = vmatprep.mubr.f32.mxu0 0.0
      %437 = vmatmul.mubr.f32.gmra.mxu0 %v297
      %v438 = vpop.f32.mrf.mxu0
      %v439 = vadd.f32 0.0, %v438
      %v440 = vpop.f32.mrf.mxu0
      %441 = vmatprep.mubr.f32.mxu0 0.0
      %442 = vmatmul.mubr.f32.gmra.mxu0 %v298
      %v443 = vpop.f32.mrf.mxu0
      %v444 = vadd.f32 0.0, %v443
      %v445 = vpop.f32.mrf.mxu0
      %446 = vmatprep.mubr.f32.mxu0 0.0
      %447 = vmatmul.mubr.f32.gmra.mxu0 %v299
      %v448 = vpop.f32.mrf.mxu0
      %v449 = vadd.f32 0.0, %v448
      %v450 = vpop.f32.mrf.mxu0
      %451 = vmatprep.mubr.f32.mxu0 0.0
      %452 = vmatmul.mubr.f32.gmra.mxu0 %v300
      %v453 = vpop.f32.mrf.mxu0
      %v454 = vadd.f32 0.0, %v453
      %v455 = vpop.f32.mrf.mxu0
      %456 = vmatprep.mubr.f32.mxu0 0.0
      %457 = vmatmul.mubr.f32.gmra.mxu0 %v301
      %v458 = vpop.f32.mrf.mxu0
      %v459 = vadd.f32 0.0, %v458
      %v460 = vpop.f32.mrf.mxu0
      %461 = vmatprep.mubr.f32.mxu0 0.0
      %462 = vmatmul.mubr.f32.gmra.mxu0 %v302
      %v463 = vpop.f32.mrf.mxu0
      %v464 = vadd.f32 0.0, %v463
      %v465 = vpop.f32.mrf.mxu0
      %466 = vmatprep.mubr.f32.mxu0 0.0
      %467 = vmatmul.mubr.f32.gmra.mxu0 %v303
      %v468 = vpop.f32.mrf.mxu0
      %v469 = vadd.f32 0.0, %v468
      %v470 = vpop.f32.mrf.mxu0
      %471 = vmatprep.mubr.f32.mxu0 0.0
      %472 = vmatmul.mubr.f32.gmra.mxu0 %v304
      %v473 = vpop.f32.mrf.mxu0
      %v474 = vadd.f32 0.0, %v473
      %v475 = vpop.f32.mrf.mxu0
      %476 = vmatprep.mubr.f32.mxu0 0.0
      %477 = vmatmul.mubr.f32.gmra.mxu0 %v305
      %v478 = vpop.f32.mrf.mxu0
      %v479 = vadd.f32 0.0, %v478
      %v480 = vpop.f32.mrf.mxu0
      %481 = vmatprep.mubr.f32.mxu0 0.0
      %482 = vmatmul.mubr.f32.gmra.mxu0 %v306
      %v483 = vpop.f32.mrf.mxu0
      %v484 = vadd.f32 0.0, %v483
      %v485 = vpop.f32.mrf.mxu0
      %486 = vmatprep.mubr.f32.mxu0 0.0
      %487 = vmatmul.mubr.f32.gmra.mxu0 %v307
      %v488 = vpop.f32.mrf.mxu0
      %v489 = vadd.f32 0.0, %v488
      %v490 = vpop.f32.mrf.mxu0
      %491 = vmatprep.mubr.f32.mxu0 0.0
      %492 = vmatmul.mubr.f32.gmra.mxu0 %v308
      %v493 = vpop.f32.mrf.mxu0
      %v494 = vadd.f32 0.0, %v493
      %v495 = vpop.f32.mrf.mxu0
      %496 = vmatprep.mubr.f32.mxu0 0.0
      %497 = vmatmul.mubr.f32.gmra.mxu0 %v309
      %v498 = vpop.f32.mrf.mxu0
      %v499 = vadd.f32 0.0, %v498
      %v500 = vpop.f32.mrf.mxu0
      %501 = vmatprep.mubr.f32.mxu0 0.0
      %502 = vmatmul.mubr.f32.gmra.mxu0 %v310
      %v503 = vpop.f32.mrf.mxu0
      %v504 = vadd.f32 0.0, %v503
      %v505 = vpop.f32.mrf.mxu0
      %506 = vdwg.mxu0
      %v507 = vmax.f32 %v394, 0.0
      %v508 = vmax.f32 %v399, 0.0
      %v509 = vmax.f32 %v404, 0.0
      %v510 = vmax.f32 %v409, 0.0
      %v511 = vmax.f32 %v414, 0.0
      %v512 = vmax.f32 %v419, 0.0
      %v513 = vmax.f32 %v424, 0.0
      %v514 = vmax.f32 %v429, 0.0
      %v515 = vmax.f32 %v434, 0.0
      %v516 = vmax.f32 %v439, 0.0
      %v517 = vmax.f32 %v444, 0.0
      %v518 = vmax.f32 %v449, 0.0
      %v519 = vmax.f32 %v454, 0.0
      %v520 = vmax.f32 %v459, 0.0
      %v521 = vmax.f32 %v464, 0.0
      %v522 = vmax.f32 %v469, 0.0
      %v523 = vmax.f32 %v474, 0.0
      %v524 = vmax.f32 %v479, 0.0
      %v525 = vmax.f32 %v484, 0.0
      %v526 = vmax.f32 %v489, 0.0
      %v527 = vmax.f32 %v494, 0.0
      %v528 = vmax.f32 %v499, 0.0
      %v529 = vmax.f32 %v504, 0.0
      %v530 = vmin.f32 %v507, 6.0
      %v531 = vmin.f32 %v508, 6.0
      %v532 = vmin.f32 %v509, 6.0
      %v533 = vmin.f32 %v510, 6.0
      %v534 = vmin.f32 %v511, 6.0
      %v535 = vmin.f32 %v512, 6.0
      %v536 = vmin.f32 %v513, 6.0
      %v537 = vmin.f32 %v514, 6.0
      %v538 = vmin.f32 %v515, 6.0
      %v539 = vmin.f32 %v516, 6.0
      %v540 = vmin.f32 %v517, 6.0
      %v541 = vmin.f32 %v518, 6.0
      %v542 = vmin.f32 %v519, 6.0
      %v543 = vmin.f32 %v520, 6.0
      %v544 = vmin.f32 %v521, 6.0
      %v545 = vmin.f32 %v522, 6.0
      %v546 = vmin.f32 %v523, 6.0
      %v547 = vmin.f32 %v524, 6.0
      %v548 = vmin.f32 %v525, 6.0
      %v549 = vmin.f32 %v526, 6.0
      %v550 = vmin.f32 %v527, 6.0
      %v551 = vmin.f32 %v528, 6.0
      %v552 = vmin.f32 %v529, 6.0
      %553 = vst [vmem:[#allocation2] sm:$0xff] %v530
      %554 = vst [vmem:[#allocation2 + $0x8] sm:$0xff] %v531
      %555 = vst [vmem:[#allocation2 + $0x10] sm:$0xff] %v532
      %556 = vst [vmem:[#allocation2 + $0x18] sm:$0xff] %v533
      %557 = vst [vmem:[#allocation2 + $0x20] sm:$0xff] %v534
      %558 = vst [vmem:[#allocation2 + $0x28] sm:$0xff] %v535
      %559 = vst [vmem:[#allocation2 + $0x30] sm:$0xff] %v536
      %560 = vst [vmem:[#allocation2 + $0x38] sm:$0xff] %v537
      %561 = vst [vmem:[#allocation2 + $0x40] sm:$0xff] %v538
      %562 = vst [vmem:[#allocation2 + $0x48] sm:$0xff] %v539
      %563 = vst [vmem:[#allocation2 + $0x50] sm:$0xff] %v540
      %564 = vst [vmem:[#allocation2 + $0x58] sm:$0xff] %v541
      %565 = vst [vmem:[#allocation2 + $0x60] sm:$0xff] %v542
      %566 = vst [vmem:[#allocation2 + $0x68] sm:$0xff] %v543
      %567 = vst [vmem:[#allocation2 + $0x70] sm:$0xff] %v544
      %568 = vst [vmem:[#allocation2 + $0x78] sm:$0xff] %v545
      %569 = vst [vmem:[#allocation2 + $0x80] sm:$0xff] %v546
      %570 = vst [vmem:[#allocation2 + $0x88] sm:$0xff] %v547
      %571 = vst [vmem:[#allocation2 + $0x90] sm:$0xff] %v548
      %572 = vst [vmem:[#allocation2 + $0x98] sm:$0xff] %v549
      %573 = vst [vmem:[#allocation2 + $0xa0] sm:$0xff] %v550
      %574 = vst [vmem:[#allocation2 + $0xa8] sm:$0xff] %v551
      %575 = vst [vmem:[#allocation2 + $0xb0] sm:$0xf] %v552
      %v576 = vld [vmem:[%s2] sm:$0xff]
      %v577 = vld [vmem:[%s2 + $0x8] sm:$0x1]
      %v578 = vld [vmem:[#allocation2] sm:$0xff]
      %v579 = vld [vmem:[#allocation2 + $0x8] sm:$0xff]
      %v580 = vld [vmem:[#allocation2 + $0x10] sm:$0xff]
      %v581 = vld [vmem:[#allocation2 + $0x18] sm:$0xff]
      %v582 = vld [vmem:[#allocation2 + $0x20] sm:$0xff]
      %v583 = vld [vmem:[#allocation2 + $0x28] sm:$0xff]
      %v584 = vld [vmem:[#allocation2 + $0x30] sm:$0xff]
      %v585 = vld [vmem:[#allocation2 + $0x38] sm:$0xff]
      %v586 = vld [vmem:[#allocation2 + $0x40] sm:$0xff]
      %v587 = vld [vmem:[#allocation2 + $0x48] sm:$0xff]
      %v588 = vld [vmem:[#allocation2 + $0x50] sm:$0xff]
      %v589 = vld [vmem:[#allocation2 + $0x58] sm:$0xff]
      %v590 = vld [vmem:[#allocation2 + $0x60] sm:$0xff]
      %v591 = vld [vmem:[#allocation2 + $0x68] sm:$0xff]
      %v592 = vld [vmem:[#allocation2 + $0x70] sm:$0xff]
      %v593 = vld [vmem:[#allocation2 + $0x78] sm:$0xff]
      %v594 = vld [vmem:[#allocation2 + $0x80] sm:$0xff]
      %v595 = vld [vmem:[#allocation2 + $0x88] sm:$0x3f]
      %v596 = vlaneseq
      %v597 = vshrl.u32 %v596, 7
      %v598 = vsub.s32 0, %v597
      %v599 = vrot.slane %v576, %v598
      %v600 = vmul.f32 %v578, %v599
      %v601 = vmul.f32 %v579, %v599
      %v602 = vmul.f32 %v580, %v599
      %v603 = vmul.f32 %v581, %v599
      %v604 = vmul.f32 %v582, %v599
      %v605 = vmul.f32 %v583, %v599
      %v606 = vmul.f32 %v584, %v599
      %v607 = vmul.f32 %v585, %v599
      %v608 = vmul.f32 %v586, %v599
      %v609 = vmul.f32 %v587, %v599
      %v610 = vmul.f32 %v588, %v599
      %v611 = vmul.f32 %v589, %v599
      %v612 = vmul.f32 %v590, %v599
      %v613 = vmul.f32 %v591, %v599
      %v614 = vmul.f32 %v592, %v599
      %v615 = vmul.f32 %v593, %v599
      %v616 = vmul.f32 %v594, %v599
      %v617 = vmul.f32 %v595, %v599
      %v618 = vld [vmem:[#allocation2 + $0x1] sm:$0xff]
      %v619 = vld [vmem:[#allocation2 + $0x9] sm:$0xff]
      %v620 = vld [vmem:[#allocation2 + $0x11] sm:$0xff]
      %v621 = vld [vmem:[#allocation2 + $0x19] sm:$0xff]
      %v622 = vld [vmem:[#allocation2 + $0x21] sm:$0xff]
      %v623 = vld [vmem:[#allocation2 + $0x29] sm:$0xff]
      %v624 = vld [vmem:[#allocation2 + $0x31] sm:$0xff]
      %v625 = vld [vmem:[#allocation2 + $0x39] sm:$0xff]
      %v626 = vld [vmem:[#allocation2 + $0x41] sm:$0xff]
      %v627 = vld [vmem:[#allocation2 + $0x49] sm:$0xff]
      %v628 = vld [vmem:[#allocation2 + $0x51] sm:$0xff]
      %v629 = vld [vmem:[#allocation2 + $0x59] sm:$0xff]
      %v630 = vld [vmem:[#allocation2 + $0x61] sm:$0xff]
      %v631 = vld [vmem:[#allocation2 + $0x69] sm:$0xff]
      %v632 = vld [vmem:[#allocation2 + $0x71] sm:$0xff]
      %v633 = vld [vmem:[#allocation2 + $0x79] sm:$0xff]
      %v634 = vld [vmem:[#allocation2 + $0x81] sm:$0xff]
      %v635 = vld [vmem:[#allocation2 + $0x89] sm:$0x3f]
      %v636 = vlaneseq
      %v637 = vshrl.u32 %v636, 7
      %v638 = vsub.s32 1, %v637
      %v639 = vrot.slane %v576, %v638
      %v640 = vmul.f32 %v618, %v639
      %v641 = vmul.f32 %v619, %v639
      %v642 = vmul.f32 %v620, %v639
      %v643 = vmul.f32 %v621, %v639
      %v644 = vmul.f32 %v622, %v639
      %v645 = vmul.f32 %v623, %v639
      %v646 = vmul.f32 %v624, %v639
      %v647 = vmul.f32 %v625, %v639
      %v648 = vmul.f32 %v626, %v639
      %v649 = vmul.f32 %v627, %v639
      %v650 = vmul.f32 %v628, %v639
      %v651 = vmul.f32 %v629, %v639
      %v652 = vmul.f32 %v630, %v639
      %v653 = vmul.f32 %v631, %v639
      %v654 = vmul.f32 %v632, %v639
      %v655 = vmul.f32 %v633, %v639
      %v656 = vmul.f32 %v634, %v639
      %v657 = vmul.f32 %v635, %v639
      %v658 = vadd.f32 %v600, %v640
      %v659 = vadd.f32 %v601, %v641
      %v660 = vadd.f32 %v602, %v642
      %v661 = vadd.f32 %v603, %v643
      %v662 = vadd.f32 %v604, %v644
      %v663 = vadd.f32 %v605, %v645
      %v664 = vadd.f32 %v606, %v646
      %v665 = vadd.f32 %v607, %v647
      %v666 = vadd.f32 %v608, %v648
      %v667 = vadd.f32 %v609, %v649
      %v668 = vadd.f32 %v610, %v650
      %v669 = vadd.f32 %v611, %v651
      %v670 = vadd.f32 %v612, %v652
      %v671 = vadd.f32 %v613, %v653
      %v672 = vadd.f32 %v614, %v654
      %v673 = vadd.f32 %v615, %v655
      %v674 = vadd.f32 %v616, %v656
      %v675 = vadd.f32 %v617, %v657
      %v676 = vld [vmem:[#allocation2 + $0x2] sm:$0xff]
      %v677 = vld [vmem:[#allocation2 + $0xa] sm:$0xff]
      %v678 = vld [vmem:[#allocation2 + $0x12] sm:$0xff]
      %v679 = vld [vmem:[#allocation2 + $0x1a] sm:$0xff]
      %v680 = vld [vmem:[#allocation2 + $0x22] sm:$0xff]
      %v681 = vld [vmem:[#allocation2 + $0x2a] sm:$0xff]
      %v682 = vld [vmem:[#allocation2 + $0x32] sm:$0xff]
      %v683 = vld [vmem:[#allocation2 + $0x3a] sm:$0xff]
      %v684 = vld [vmem:[#allocation2 + $0x42] sm:$0xff]
      %v685 = vld [vmem:[#allocation2 + $0x4a] sm:$0xff]
      %v686 = vld [vmem:[#allocation2 + $0x52] sm:$0xff]
      %v687 = vld [vmem:[#allocation2 + $0x5a] sm:$0xff]
      %v688 = vld [vmem:[#allocation2 + $0x62] sm:$0xff]
      %v689 = vld [vmem:[#allocation2 + $0x6a] sm:$0xff]
      %v690 = vld [vmem:[#allocation2 + $0x72] sm:$0xff]
      %v691 = vld [vmem:[#allocation2 + $0x7a] sm:$0xff]
      %v692 = vld [vmem:[#allocation2 + $0x82] sm:$0xff]
      %v693 = vld [vmem:[#allocation2 + $0x8a] sm:$0x3f]
      %v694 = vlaneseq
      %v695 = vshrl.u32 %v694, 7
      %v696 = vsub.s32 2, %v695
      %v697 = vrot.slane %v576, %v696
      %v698 = vmul.f32 %v676, %v697
      %v699 = vmul.f32 %v677, %v697
      %v700 = vmul.f32 %v678, %v697
      %v701 = vmul.f32 %v679, %v697
      %v702 = vmul.f32 %v680, %v697
      %v703 = vmul.f32 %v681, %v697
      %v704 = vmul.f32 %v682, %v697
      %v705 = vmul.f32 %v683, %v697
      %v706 = vmul.f32 %v684, %v697
      %v707 = vmul.f32 %v685, %v697
      %v708 = vmul.f32 %v686, %v697
      %v709 = vmul.f32 %v687, %v697
      %v710 = vmul.f32 %v688, %v697
      %v711 = vmul.f32 %v689, %v697
      %v712 = vmul.f32 %v690, %v697
      %v713 = vmul.f32 %v691, %v697
      %v714 = vmul.f32 %v692, %v697
      %v715 = vmul.f32 %v693, %v697
      %v716 = vadd.f32 %v658, %v698
      %v717 = vadd.f32 %v659, %v699
      %v718 = vadd.f32 %v660, %v700
      %v719 = vadd.f32 %v661, %v701
      %v720 = vadd.f32 %v662, %v702
      %v721 = vadd.f32 %v663, %v703
      %v722 = vadd.f32 %v664, %v704
      %v723 = vadd.f32 %v665, %v705
      %v724 = vadd.f32 %v666, %v706
      %v725 = vadd.f32 %v667, %v707
      %v726 = vadd.f32 %v668, %v708
      %v727 = vadd.f32 %v669, %v709
      %v728 = vadd.f32 %v670, %v710
      %v729 = vadd.f32 %v671, %v711
      %v730 = vadd.f32 %v672, %v712
      %v731 = vadd.f32 %v673, %v713
      %v732 = vadd.f32 %v674, %v714
      %v733 = vadd.f32 %v675, %v715
      %v734 = vld [vmem:[#allocation2 + $0x8a] sm:$0xff]
      %v735 = vld [vmem:[#allocation2 + $0x92] sm:$0xff]
      %v736 = vld [vmem:[#allocation2 + $0x9a] sm:$0x3f]
      %v737 = vlaneseq
      %v738 = vshrl.u32 %v737, 7
      %v739 = vsub.s32 3, %v738
      %v740 = vrot.slane %v576, %v739
      %v741 = vmul.f32 %v678, %v740
      %v742 = vmul.f32 %v679, %v740
      %v743 = vmul.f32 %v680, %v740
      %v744 = vmul.f32 %v681, %v740
      %v745 = vmul.f32 %v682, %v740
      %v746 = vmul.f32 %v683, %v740
      %v747 = vmul.f32 %v684, %v740
      %v748 = vmul.f32 %v685, %v740
      %v749 = vmul.f32 %v686, %v740
      %v750 = vmul.f32 %v687, %v740
      %v751 = vmul.f32 %v688, %v740
      %v752 = vmul.f32 %v689, %v740
      %v753 = vmul.f32 %v690, %v740
      %v754 = vmul.f32 %v691, %v740
      %v755 = vmul.f32 %v692, %v740
      %v756 = vmul.f32 %v734, %v740
      %v757 = vmul.f32 %v735, %v740
      %v758 = vmul.f32 %v736, %v740
      %v759 = vadd.f32 %v716, %v741
      %v760 = vadd.f32 %v717, %v742
      %v761 = vadd.f32 %v718, %v743
      %v762 = vadd.f32 %v719, %v744
      %v763 = vadd.f32 %v720, %v745
      %v764 = vadd.f32 %v721, %v746
      %v765 = vadd.f32 %v722, %v747
      %v766 = vadd.f32 %v723, %v748
      %v767 = vadd.f32 %v724, %v749
      %v768 = vadd.f32 %v725, %v750
      %v769 = vadd.f32 %v726, %v751
      %v770 = vadd.f32 %v727, %v752
      %v771 = vadd.f32 %v728, %v753
      %v772 = vadd.f32 %v729, %v754
      %v773 = vadd.f32 %v730, %v755
      %v774 = vadd.f32 %v731, %v756
      %v775 = vadd.f32 %v732, %v757
      %v776 = vadd.f32 %v733, %v758
      %v777 = vld [vmem:[#allocation2 + $0x13] sm:$0xff]
      %v778 = vld [vmem:[#allocation2 + $0x1b] sm:$0xff]
      %v779 = vld [vmem:[#allocation2 + $0x23] sm:$0xff]
      %v780 = vld [vmem:[#allocation2 + $0x2b] sm:$0xff]
      %v781 = vld [vmem:[#allocation2 + $0x33] sm:$0xff]
      %v782 = vld [vmem:[#allocation2 + $0x3b] sm:$0xff]
      %v783 = vld [vmem:[#allocation2 + $0x43] sm:$0xff]
      %v784 = vld [vmem:[#allocation2 + $0x4b] sm:$0xff]
      %v785 = vld [vmem:[#allocation2 + $0x53] sm:$0xff]
      %v786 = vld [vmem:[#allocation2 + $0x5b] sm:$0xff]
      %v787 = vld [vmem:[#allocation2 + $0x63] sm:$0xff]
      %v788 = vld [vmem:[#allocation2 + $0x6b] sm:$0xff]
      %v789 = vld [vmem:[#allocation2 + $0x73] sm:$0xff]
      %v790 = vld [vmem:[#allocation2 + $0x7b] sm:$0xff]
      %v791 = vld [vmem:[#allocation2 + $0x83] sm:$0xff]
      %v792 = vld [vmem:[#allocation2 + $0x8b] sm:$0xff]
      %v793 = vld [vmem:[#allocation2 + $0x93] sm:$0xff]
      %v794 = vld [vmem:[#allocation2 + $0x9b] sm:$0x3f]
      %v795 = vlaneseq
      %v796 = vshrl.u32 %v795, 7
      %v797 = vsub.s32 4, %v796
      %v798 = vrot.slane %v576, %v797
      %v799 = vmul.f32 %v777, %v798
      %v800 = vmul.f32 %v778, %v798
      %v801 = vmul.f32 %v779, %v798
      %v802 = vmul.f32 %v780, %v798
      %v803 = vmul.f32 %v781, %v798
      %v804 = vmul.f32 %v782, %v798
      %v805 = vmul.f32 %v783, %v798
      %v806 = vmul.f32 %v784, %v798
      %v807 = vmul.f32 %v785, %v798
      %v808 = vmul.f32 %v786, %v798
      %v809 = vmul.f32 %v787, %v798
      %v810 = vmul.f32 %v788, %v798
      %v811 = vmul.f32 %v789, %v798
      %v812 = vmul.f32 %v790, %v798
      %v813 = vmul.f32 %v791, %v798
      %v814 = vmul.f32 %v792, %v798
      %v815 = vmul.f32 %v793, %v798
      %v816 = vmul.f32 %v794, %v798
      %v817 = vadd.f32 %v759, %v799
      %v818 = vadd.f32 %v760, %v800
      %v819 = vadd.f32 %v761, %v801
      %v820 = vadd.f32 %v762, %v802
      %v821 = vadd.f32 %v763, %v803
      %v822 = vadd.f32 %v764, %v804
      %v823 = vadd.f32 %v765, %v805
      %v824 = vadd.f32 %v766, %v806
      %v825 = vadd.f32 %v767, %v807
      %v826 = vadd.f32 %v768, %v808
      %v827 = vadd.f32 %v769, %v809
      %v828 = vadd.f32 %v770, %v810
      %v829 = vadd.f32 %v771, %v811
      %v830 = vadd.f32 %v772, %v812
      %v831 = vadd.f32 %v773, %v813
      %v832 = vadd.f32 %v774, %v814
      %v833 = vadd.f32 %v775, %v815
      %v834 = vadd.f32 %v776, %v816
      %v835 = vld [vmem:[#allocation2 + $0x14] sm:$0xff]
      %v836 = vld [vmem:[#allocation2 + $0x1c] sm:$0xff]
      %v837 = vld [vmem:[#allocation2 + $0x24] sm:$0xff]
      %v838 = vld [vmem:[#allocation2 + $0x2c] sm:$0xff]
      %v839 = vld [vmem:[#allocation2 + $0x34] sm:$0xff]
      %v840 = vld [vmem:[#allocation2 + $0x3c] sm:$0xff]
      %v841 = vld [vmem:[#allocation2 + $0x44] sm:$0xff]
      %v842 = vld [vmem:[#allocation2 + $0x4c] sm:$0xff]
      %v843 = vld [vmem:[#allocation2 + $0x54] sm:$0xff]
      %v844 = vld [vmem:[#allocation2 + $0x5c] sm:$0xff]
      %v845 = vld [vmem:[#allocation2 + $0x64] sm:$0xff]
      %v846 = vld [vmem:[#allocation2 + $0x6c] sm:$0xff]
      %v847 = vld [vmem:[#allocation2 + $0x74] sm:$0xff]
      %v848 = vld [vmem:[#allocation2 + $0x7c] sm:$0xff]
      %v849 = vld [vmem:[#allocation2 + $0x84] sm:$0xff]
      %v850 = vld [vmem:[#allocation2 + $0x8c] sm:$0xff]
      %v851 = vld [vmem:[#allocation2 + $0x94] sm:$0xff]
      %v852 = vld [vmem:[#allocation2 + $0x9c] sm:$0x3f]
      %v853 = vlaneseq
      %v854 = vshrl.u32 %v853, 7
      %v855 = vsub.s32 5, %v854
      %v856 = vrot.slane %v576, %v855
      %v857 = vmul.f32 %v835, %v856
      %v858 = vmul.f32 %v836, %v856
      %v859 = vmul.f32 %v837, %v856
      %v860 = vmul.f32 %v838, %v856
      %v861 = vmul.f32 %v839, %v856
      %v862 = vmul.f32 %v840, %v856
      %v863 = vmul.f32 %v841, %v856
      %v864 = vmul.f32 %v842, %v856
      %v865 = vmul.f32 %v843, %v856
      %v866 = vmul.f32 %v844, %v856
      %v867 = vmul.f32 %v845, %v856
      %v868 = vmul.f32 %v846, %v856
      %v869 = vmul.f32 %v847, %v856
      %v870 = vmul.f32 %v848, %v856
      %v871 = vmul.f32 %v849, %v856
      %v872 = vmul.f32 %v850, %v856
      %v873 = vmul.f32 %v851, %v856
      %v874 = vmul.f32 %v852, %v856
      %v875 = vadd.f32 %v817, %v857
      %v876 = vadd.f32 %v818, %v858
      %v877 = vadd.f32 %v819, %v859
      %v878 = vadd.f32 %v820, %v860
      %v879 = vadd.f32 %v821, %v861
      %v880 = vadd.f32 %v822, %v862
      %v881 = vadd.f32 %v823, %v863
      %v882 = vadd.f32 %v824, %v864
      %v883 = vadd.f32 %v825, %v865
      %v884 = vadd.f32 %v826, %v866
      %v885 = vadd.f32 %v827, %v867
      %v886 = vadd.f32 %v828, %v868
      %v887 = vadd.f32 %v829, %v869
      %v888 = vadd.f32 %v830, %v870
      %v889 = vadd.f32 %v831, %v871
      %v890 = vadd.f32 %v832, %v872
      %v891 = vadd.f32 %v833, %v873
      %v892 = vadd.f32 %v834, %v874
      %v893 = vld [vmem:[#allocation2 + $0x9c] sm:$0xff]
      %v894 = vld [vmem:[#allocation2 + $0xa4] sm:$0xff]
      %v895 = vld [vmem:[#allocation2 + $0xac] sm:$0x3f]
      %v896 = vlaneseq
      %v897 = vshrl.u32 %v896, 7
      %v898 = vsub.s32 6, %v897
      %v899 = vrot.slane %v576, %v898
      %v900 = vmul.f32 %v837, %v899
      %v901 = vmul.f32 %v838, %v899
      %v902 = vmul.f32 %v839, %v899
      %v903 = vmul.f32 %v840, %v899
      %v904 = vmul.f32 %v841, %v899
      %v905 = vmul.f32 %v842, %v899
      %v906 = vmul.f32 %v843, %v899
      %v907 = vmul.f32 %v844, %v899
      %v908 = vmul.f32 %v845, %v899
      %v909 = vmul.f32 %v846, %v899
      %v910 = vmul.f32 %v847, %v899
      %v911 = vmul.f32 %v848, %v899
      %v912 = vmul.f32 %v849, %v899
      %v913 = vmul.f32 %v850, %v899
      %v914 = vmul.f32 %v851, %v899
      %v915 = vmul.f32 %v893, %v899
      %v916 = vmul.f32 %v894, %v899
      %v917 = vmul.f32 %v895, %v899
      %v918 = vadd.f32 %v875, %v900
      %v919 = vadd.f32 %v876, %v901
      %v920 = vadd.f32 %v877, %v902
      %v921 = vadd.f32 %v878, %v903
      %v922 = vadd.f32 %v879, %v904
      %v923 = vadd.f32 %v880, %v905
      %v924 = vadd.f32 %v881, %v906
      %v925 = vadd.f32 %v882, %v907
      %v926 = vadd.f32 %v883, %v908
      %v927 = vadd.f32 %v884, %v909
      %v928 = vadd.f32 %v885, %v910
      %v929 = vadd.f32 %v886, %v911
      %v930 = vadd.f32 %v887, %v912
      %v931 = vadd.f32 %v888, %v913
      %v932 = vadd.f32 %v889, %v914
      %v933 = vadd.f32 %v890, %v915
      %v934 = vadd.f32 %v891, %v916
      %v935 = vadd.f32 %v892, %v917
      %v936 = vld [vmem:[#allocation2 + $0x25] sm:$0xff]
      %v937 = vld [vmem:[#allocation2 + $0x2d] sm:$0xff]
      %v938 = vld [vmem:[#allocation2 + $0x35] sm:$0xff]
      %v939 = vld [vmem:[#allocation2 + $0x3d] sm:$0xff]
      %v940 = vld [vmem:[#allocation2 + $0x45] sm:$0xff]
      %v941 = vld [vmem:[#allocation2 + $0x4d] sm:$0xff]
      %v942 = vld [vmem:[#allocation2 + $0x55] sm:$0xff]
      %v943 = vld [vmem:[#allocation2 + $0x5d] sm:$0xff]
      %v944 = vld [vmem:[#allocation2 + $0x65] sm:$0xff]
      %v945 = vld [vmem:[#allocation2 + $0x6d] sm:$0xff]
      %v946 = vld [vmem:[#allocation2 + $0x75] sm:$0xff]
      %v947 = vld [vmem:[#allocation2 + $0x7d] sm:$0xff]
      %v948 = vld [vmem:[#allocation2 + $0x85] sm:$0xff]
      %v949 = vld [vmem:[#allocation2 + $0x8d] sm:$0xff]
      %v950 = vld [vmem:[#allocation2 + $0x95] sm:$0xff]
      %v951 = vld [vmem:[#allocation2 + $0x9d] sm:$0xff]
      %v952 = vld [vmem:[#allocation2 + $0xa5] sm:$0xff]
      %v953 = vld [vmem:[#allocation2 + $0xad] sm:$0x3f]
      %v954 = vlaneseq
      %v955 = vshrl.u32 %v954, 7
      %v956 = vsub.s32 7, %v955
      %v957 = vrot.slane %v576, %v956
      %v958 = vmul.f32 %v936, %v957
      %v959 = vmul.f32 %v937, %v957
      %v960 = vmul.f32 %v938, %v957
      %v961 = vmul.f32 %v939, %v957
      %v962 = vmul.f32 %v940, %v957
      %v963 = vmul.f32 %v941, %v957
      %v964 = vmul.f32 %v942, %v957
      %v965 = vmul.f32 %v943, %v957
      %v966 = vmul.f32 %v944, %v957
      %v967 = vmul.f32 %v945, %v957
      %v968 = vmul.f32 %v946, %v957
      %v969 = vmul.f32 %v947, %v957
      %v970 = vmul.f32 %v948, %v957
      %v971 = vmul.f32 %v949, %v957
      %v972 = vmul.f32 %v950, %v957
      %v973 = vmul.f32 %v951, %v957
      %v974 = vmul.f32 %v952, %v957
      %v975 = vmul.f32 %v953, %v957
      %v976 = vadd.f32 %v918, %v958
      %v977 = vadd.f32 %v919, %v959
      %v978 = vadd.f32 %v920, %v960
      %v979 = vadd.f32 %v921, %v961
      %v980 = vadd.f32 %v922, %v962
      %v981 = vadd.f32 %v923, %v963
      %v982 = vadd.f32 %v924, %v964
      %v983 = vadd.f32 %v925, %v965
      %v984 = vadd.f32 %v926, %v966
      %v985 = vadd.f32 %v927, %v967
      %v986 = vadd.f32 %v928, %v968
      %v987 = vadd.f32 %v929, %v969
      %v988 = vadd.f32 %v930, %v970
      %v989 = vadd.f32 %v931, %v971
      %v990 = vadd.f32 %v932, %v972
      %v991 = vadd.f32 %v933, %v973
      %v992 = vadd.f32 %v934, %v974
      %v993 = vadd.f32 %v935, %v975
      %v994 = vld [vmem:[#allocation2 + $0x26] sm:$0xff]
      %v995 = vld [vmem:[#allocation2 + $0x2e] sm:$0xff]
      %v996 = vld [vmem:[#allocation2 + $0x36] sm:$0xff]
      %v997 = vld [vmem:[#allocation2 + $0x3e] sm:$0xff]
      %v998 = vld [vmem:[#allocation2 + $0x46] sm:$0xff]
      %v999 = vld [vmem:[#allocation2 + $0x4e] sm:$0xff]
      %v1000 = vld [vmem:[#allocation2 + $0x56] sm:$0xff]
      %v1001 = vld [vmem:[#allocation2 + $0x5e] sm:$0xff]
      %v1002 = vld [vmem:[#allocation2 + $0x66] sm:$0xff]
      %v1003 = vld [vmem:[#allocation2 + $0x6e] sm:$0xff]
      %v1004 = vld [vmem:[#allocation2 + $0x76] sm:$0xff]
      %v1005 = vld [vmem:[#allocation2 + $0x7e] sm:$0xff]
      %v1006 = vld [vmem:[#allocation2 + $0x86] sm:$0xff]
      %v1007 = vld [vmem:[#allocation2 + $0x8e] sm:$0xff]
      %v1008 = vld [vmem:[#allocation2 + $0x96] sm:$0xff]
      %v1009 = vld [vmem:[#allocation2 + $0x9e] sm:$0xff]
      %v1010 = vld [vmem:[#allocation2 + $0xa6] sm:$0xff]
      %v1011 = vld [vmem:[#allocation2 + $0xae] sm:$0x3f]
      %v1012 = vlaneseq
      %v1013 = vshrl.u32 %v1012, 7
      %v1014 = vsub.s32 0, %v1013
      %v1015 = vrot.slane %v577, %v1014
      %v1016 = vmul.f32 %v994, %v1015
      %v1017 = vmul.f32 %v995, %v1015
      %v1018 = vmul.f32 %v996, %v1015
      %v1019 = vmul.f32 %v997, %v1015
      %v1020 = vmul.f32 %v998, %v1015
      %v1021 = vmul.f32 %v999, %v1015
      %v1022 = vmul.f32 %v1000, %v1015
      %v1023 = vmul.f32 %v1001, %v1015
      %v1024 = vmul.f32 %v1002, %v1015
      %v1025 = vmul.f32 %v1003, %v1015
      %v1026 = vmul.f32 %v1004, %v1015
      %v1027 = vmul.f32 %v1005, %v1015
      %v1028 = vmul.f32 %v1006, %v1015
      %v1029 = vmul.f32 %v1007, %v1015
      %v1030 = vmul.f32 %v1008, %v1015
      %v1031 = vmul.f32 %v1009, %v1015
      %v1032 = vmul.f32 %v1010, %v1015
      %v1033 = vmul.f32 %v1011, %v1015
      %v1034 = vadd.f32 %v976, %v1016
      %v1035 = vadd.f32 %v977, %v1017
      %v1036 = vadd.f32 %v978, %v1018
      %v1037 = vadd.f32 %v979, %v1019
      %v1038 = vadd.f32 %v980, %v1020
      %v1039 = vadd.f32 %v981, %v1021
      %v1040 = vadd.f32 %v982, %v1022
      %v1041 = vadd.f32 %v983, %v1023
      %v1042 = vadd.f32 %v984, %v1024
      %v1043 = vadd.f32 %v985, %v1025
      %v1044 = vadd.f32 %v986, %v1026
      %v1045 = vadd.f32 %v987, %v1027
      %v1046 = vadd.f32 %v988, %v1028
      %v1047 = vadd.f32 %v989, %v1029
      %v1048 = vadd.f32 %v990, %v1030
      %v1049 = vadd.f32 %v991, %v1031
      %v1050 = vadd.f32 %v992, %v1032
      %v1051 = vadd.f32 %v993, %v1033
      %v1052 = vld [vmem:[%s3] sm:$0x1]
      %v1054 = vlaneseq
      %v1055 = vshrl.u32 %v1054, 7
      %v1056 = vsub.s32 0, %v1055
      %v1057 = vrot.slane %v1052, %v1056
      %v1059 = vadd.f32 %v1034, %v1057
      %v1060 = vadd.f32 %v1035, %v1057
      %v1061 = vadd.f32 %v1036, %v1057
      %v1062 = vadd.f32 %v1037, %v1057
      %v1063 = vadd.f32 %v1038, %v1057
      %v1064 = vadd.f32 %v1039, %v1057
      %v1065 = vadd.f32 %v1040, %v1057
      %v1066 = vadd.f32 %v1041, %v1057
      %v1067 = vadd.f32 %v1042, %v1057
      %v1068 = vadd.f32 %v1043, %v1057
      %v1069 = vadd.f32 %v1044, %v1057
      %v1070 = vadd.f32 %v1045, %v1057
      %v1071 = vadd.f32 %v1046, %v1057
      %v1072 = vadd.f32 %v1047, %v1057
      %v1073 = vadd.f32 %v1048, %v1057
      %v1074 = vadd.f32 %v1049, %v1057
      %v1075 = vadd.f32 %v1050, %v1057
      %v1076 = vadd.f32 %v1051, %v1057
      %v1077 = vmax.f32 %v1059, 0.0
      %v1078 = vmax.f32 %v1060, 0.0
      %v1079 = vmax.f32 %v1061, 0.0
      %v1080 = vmax.f32 %v1062, 0.0
      %v1081 = vmax.f32 %v1063, 0.0
      %v1082 = vmax.f32 %v1064, 0.0
      %v1083 = vmax.f32 %v1065, 0.0
      %v1084 = vmax.f32 %v1066, 0.0
      %v1085 = vmax.f32 %v1067, 0.0
      %v1086 = vmax.f32 %v1068, 0.0
      %v1087 = vmax.f32 %v1069, 0.0
      %v1088 = vmax.f32 %v1070, 0.0
      %v1089 = vmax.f32 %v1071, 0.0
      %v1090 = vmax.f32 %v1072, 0.0
      %v1091 = vmax.f32 %v1073, 0.0
      %v1092 = vmax.f32 %v1074, 0.0
      %v1093 = vmax.f32 %v1075, 0.0
      %v1094 = vmax.f32 %v1076, 0.0
      %v1095 = vmin.f32 %v1077, 6.0
      %v1096 = vmin.f32 %v1078, 6.0
      %v1097 = vmin.f32 %v1079, 6.0
      %v1098 = vmin.f32 %v1080, 6.0
      %v1099 = vmin.f32 %v1081, 6.0
      %v1100 = vmin.f32 %v1082, 6.0
      %v1101 = vmin.f32 %v1083, 6.0
      %v1102 = vmin.f32 %v1084, 6.0
      %v1103 = vmin.f32 %v1085, 6.0
      %v1104 = vmin.f32 %v1086, 6.0
      %v1105 = vmin.f32 %v1087, 6.0
      %v1106 = vmin.f32 %v1088, 6.0
      %v1107 = vmin.f32 %v1089, 6.0
      %v1108 = vmin.f32 %v1090, 6.0
      %v1109 = vmin.f32 %v1091, 6.0
      %v1110 = vmin.f32 %v1092, 6.0
      %v1111 = vmin.f32 %v1093, 6.0
      %v1112 = vmin.f32 %v1094, 6.0
      %v1113 = vld [vmem:[%s4] sm:$0xff]
      %v1114 = vld [vmem:[%s4 + $0x8] sm:$0xff]
      %v1115 = vld [vmem:[%s4 + $0x10] sm:$0xff]
      %v1116 = vld [vmem:[%s4 + $0x18] sm:$0xff]
      %v1117 = vld [vmem:[%s4 + $0x20] sm:$0xff]
      %v1118 = vld [vmem:[%s4 + $0x28] sm:$0xff]
      %v1119 = vld [vmem:[%s4 + $0x30] sm:$0xff]
      %v1120 = vld [vmem:[%s4 + $0x38] sm:$0xff]
      %v1121 = vld [vmem:[%s4 + $0x40] sm:$0xff]
      %v1122 = vld [vmem:[%s4 + $0x48] sm:$0xff]
      %v1123 = vld [vmem:[%s4 + $0x50] sm:$0xff]
      %v1124 = vld [vmem:[%s4 + $0x58] sm:$0xff]
      %v1125 = vld [vmem:[%s4 + $0x60] sm:$0xff]
      %v1126 = vld [vmem:[%s4 + $0x68] sm:$0xff]
      %v1127 = vld [vmem:[%s4 + $0x70] sm:$0xff]
      %v1128 = vld [vmem:[%s4 + $0x78] sm:$0xff]
      %v1129 = vld [vmem:[%s5] sm:$0x1]
      %v1131 = vlaneseq
      %v1132 = vshrl.u32 %v1131, 7
      %v1133 = vsub.s32 0, %v1132
      %v1134 = vrot.slane %v1129, %v1133
      %1136 = vmatprep.subr.mxu0 0.0
      %1137 = vmatpush1.msra.mxu0 %v1128
      %1138 = vmatprep.subr.mxu0 0.0
      %1139 = vmatpush1.msra.mxu0 %v1127
      %1140 = vmatprep.subr.mxu0 0.0
      %1141 = vmatpush1.msra.mxu0 %v1126
      %1142 = vmatprep.subr.mxu0 0.0
      %1143 = vmatpush1.msra.mxu0 %v1125
      %1144 = vmatprep.subr.mxu0 0.0
      %1145 = vmatpush1.msra.mxu0 %v1124
      %1146 = vmatprep.subr.mxu0 0.0
      %1147 = vmatpush1.msra.mxu0 %v1123
      %1148 = vmatprep.subr.mxu0 0.0
      %1149 = vmatpush1.msra.mxu0 %v1122
      %1150 = vmatprep.subr.mxu0 0.0
      %1151 = vmatpush1.msra.mxu0 %v1121
      %1152 = vmatprep.subr.mxu0 0.0
      %1153 = vmatpush1.msra.mxu0 %v1120
      %1154 = vmatprep.subr.mxu0 0.0
      %1155 = vmatpush1.msra.mxu0 %v1119
      %1156 = vmatprep.subr.mxu0 0.0
      %1157 = vmatpush1.msra.mxu0 %v1118
      %1158 = vmatprep.subr.mxu0 0.0
      %1159 = vmatpush1.msra.mxu0 %v1117
      %1160 = vmatprep.subr.mxu0 0.0
      %1161 = vmatpush1.msra.mxu0 %v1116
      %1162 = vmatprep.subr.mxu0 0.0
      %1163 = vmatpush1.msra.mxu0 %v1115
      %1164 = vmatprep.subr.mxu0 0.0
      %1165 = vmatpush1.msra.mxu0 %v1114
      %1166 = vmatprep.subr.mxu0 0.0
      %1167 = vmatpush1.msra.mxu0 %v1113
      %1168 = vmatprep.subr.mxu0 0.0
      %1169 = vmatpush2.msra.mxu0 0.0
      %1170 = vmatprep.subr.mxu0 0.0
      %1171 = vmatpush2.msra.mxu0 0.0
      %1172 = vmatprep.subr.mxu0 0.0
      %1173 = vmatpush2.msra.mxu0 0.0
      %1174 = vmatprep.subr.mxu0 0.0
      %1175 = vmatpush2.msra.mxu0 0.0
      %1176 = vmatprep.subr.mxu0 0.0
      %1177 = vmatpush2.msra.mxu0 0.0
      %1178 = vmatprep.subr.mxu0 0.0
      %1179 = vmatpush2.msra.mxu0 0.0
      %1180 = vmatprep.subr.mxu0 0.0
      %1181 = vmatpush2.msra.mxu0 0.0
      %1182 = vmatprep.subr.mxu0 0.0
      %1183 = vmatpush2.msra.mxu0 0.0
      %1184 = vmatprep.subr.mxu0 0.0
      %1185 = vmatpush2.msra.mxu0 0.0
      %1186 = vmatprep.subr.mxu0 0.0
      %1187 = vmatpush2.msra.mxu0 0.0
      %1188 = vmatprep.subr.mxu0 0.0
      %1189 = vmatpush2.msra.mxu0 0.0
      %1190 = vmatprep.subr.mxu0 0.0
      %1191 = vmatpush2.msra.mxu0 0.0
      %1192 = vmatprep.subr.mxu0 0.0
      %1193 = vmatpush2.msra.mxu0 0.0
      %1194 = vmatprep.subr.mxu0 0.0
      %1195 = vmatpush2.msra.mxu0 0.0
      %1196 = vmatprep.subr.mxu0 0.0
      %1197 = vmatpush2.msra.mxu0 0.0
      %1198 = vmatprep.subr.mxu0 0.0
      %1199 = vmatpush2.msra.mxu0 0.0
      %1200 = vmatprep.mubr.f32.mxu0 0.0
      %1201 = vmatmul.mubr.f32.gmra.mxu0 %v1095
      %v1202 = vpop.f32.mrf.mxu0
      %v1203 = vadd.f32 %v1134, %v1202
      %v1204 = vpop.f32.mrf.mxu0
      %1205 = vmatprep.mubr.f32.mxu0 0.0
      %1206 = vmatmul.mubr.f32.gmra.mxu0 %v1096
      %v1207 = vpop.f32.mrf.mxu0
      %v1208 = vadd.f32 %v1134, %v1207
      %v1209 = vpop.f32.mrf.mxu0
      %1210 = vmatprep.mubr.f32.mxu0 0.0
      %1211 = vmatmul.mubr.f32.gmra.mxu0 %v1097
      %v1212 = vpop.f32.mrf.mxu0
      %v1213 = vadd.f32 %v1134, %v1212
      %v1214 = vpop.f32.mrf.mxu0
      %1215 = vmatprep.mubr.f32.mxu0 0.0
      %1216 = vmatmul.mubr.f32.gmra.mxu0 %v1098
      %v1217 = vpop.f32.mrf.mxu0
      %v1218 = vadd.f32 %v1134, %v1217
      %v1219 = vpop.f32.mrf.mxu0
      %1220 = vmatprep.mubr.f32.mxu0 0.0
      %1221 = vmatmul.mubr.f32.gmra.mxu0 %v1099
      %v1222 = vpop.f32.mrf.mxu0
      %v1223 = vadd.f32 %v1134, %v1222
      %v1224 = vpop.f32.mrf.mxu0
      %1225 = vmatprep.mubr.f32.mxu0 0.0
      %1226 = vmatmul.mubr.f32.gmra.mxu0 %v1100
      %v1227 = vpop.f32.mrf.mxu0
      %v1228 = vadd.f32 %v1134, %v1227
      %v1229 = vpop.f32.mrf.mxu0
      %1230 = vmatprep.mubr.f32.mxu0 0.0
      %1231 = vmatmul.mubr.f32.gmra.mxu0 %v1101
      %v1232 = vpop.f32.mrf.mxu0
      %v1233 = vadd.f32 %v1134, %v1232
      %v1234 = vpop.f32.mrf.mxu0
      %1235 = vmatprep.mubr.f32.mxu0 0.0
      %1236 = vmatmul.mubr.f32.gmra.mxu0 %v1102
      %v1237 = vpop.f32.mrf.mxu0
      %v1238 = vadd.f32 %v1134, %v1237
      %v1239 = vpop.f32.mrf.mxu0
      %1240 = vmatprep.mubr.f32.mxu0 0.0
      %1241 = vmatmul.mubr.f32.gmra.mxu0 %v1103
      %v1242 = vpop.f32.mrf.mxu0
      %v1243 = vadd.f32 %v1134, %v1242
      %v1244 = vpop.f32.mrf.mxu0
      %1245 = vmatprep.mubr.f32.mxu0 0.0
      %1246 = vmatmul.mubr.f32.gmra.mxu0 %v1104
      %v1247 = vpop.f32.mrf.mxu0
      %v1248 = vadd.f32 %v1134, %v1247
      %v1249 = vpop.f32.mrf.mxu0
      %1250 = vmatprep.mubr.f32.mxu0 0.0
      %1251 = vmatmul.mubr.f32.gmra.mxu0 %v1105
      %v1252 = vpop.f32.mrf.mxu0
      %v1253 = vadd.f32 %v1134, %v1252
      %v1254 = vpop.f32.mrf.mxu0
      %1255 = vmatprep.mubr.f32.mxu0 0.0
      %1256 = vmatmul.mubr.f32.gmra.mxu0 %v1106
      %v1257 = vpop.f32.mrf.mxu0
      %v1258 = vadd.f32 %v1134, %v1257
      %v1259 = vpop.f32.mrf.mxu0
      %1260 = vmatprep.mubr.f32.mxu0 0.0
      %1261 = vmatmul.mubr.f32.gmra.mxu0 %v1107
      %v1262 = vpop.f32.mrf.mxu0
      %v1263 = vadd.f32 %v1134, %v1262
      %v1264 = vpop.f32.mrf.mxu0
      %1265 = vmatprep.mubr.f32.mxu0 0.0
      %1266 = vmatmul.mubr.f32.gmra.mxu0 %v1108
      %v1267 = vpop.f32.mrf.mxu0
      %v1268 = vadd.f32 %v1134, %v1267
      %v1269 = vpop.f32.mrf.mxu0
      %1270 = vmatprep.mubr.f32.mxu0 0.0
      %1271 = vmatmul.mubr.f32.gmra.mxu0 %v1109
      %v1272 = vpop.f32.mrf.mxu0
      %v1273 = vadd.f32 %v1134, %v1272
      %v1274 = vpop.f32.mrf.mxu0
      %1275 = vmatprep.mubr.f32.mxu0 0.0
      %1276 = vmatmul.mubr.f32.gmra.mxu0 %v1110
      %v1277 = vpop.f32.mrf.mxu0
      %v1278 = vadd.f32 %v1134, %v1277
      %v1279 = vpop.f32.mrf.mxu0
      %1280 = vmatprep.mubr.f32.mxu0 0.0
      %1281 = vmatmul.mubr.f32.gmra.mxu0 %v1111
      %v1282 = vpop.f32.mrf.mxu0
      %v1283 = vadd.f32 %v1134, %v1282
      %v1284 = vpop.f32.mrf.mxu0
      %1285 = vmatprep.mubr.f32.mxu0 0.0
      %1286 = vmatmul.mubr.f32.gmra.mxu0 %v1112
      %v1287 = vpop.f32.mrf.mxu0
      %v1288 = vadd.f32 %v1134, %v1287
      %v1289 = vpop.f32.mrf.mxu0
      %1290 = vdwg.mxu0
      %v1291 = vld [vmem:[%s278 + $0x13] sm:$0xff]
      %v1292 = vld [vmem:[%s278 + $0x1b] sm:$0xff]
      %v1293 = vld [vmem:[%s278 + $0x23] sm:$0xff]
      %v1294 = vld [vmem:[%s278 + $0x2b] sm:$0xff]
      %v1295 = vld [vmem:[%s278 + $0x33] sm:$0xff]
      %v1296 = vld [vmem:[%s278 + $0x3b] sm:$0xff]
      %v1297 = vld [vmem:[%s278 + $0x43] sm:$0xff]
      %v1298 = vld [vmem:[%s278 + $0x4b] sm:$0xff]
      %v1299 = vld [vmem:[%s278 + $0x53] sm:$0xff]
      %v1300 = vld [vmem:[%s278 + $0x5b] sm:$0xff]
      %v1301 = vld [vmem:[%s278 + $0x63] sm:$0xff]
      %v1302 = vld [vmem:[%s278 + $0x6b] sm:$0xff]
      %v1303 = vld [vmem:[%s278 + $0x73] sm:$0xff]
      %v1304 = vld [vmem:[%s278 + $0x7b] sm:$0xff]
      %v1305 = vld [vmem:[%s278 + $0x83] sm:$0xff]
      %v1306 = vld [vmem:[%s278 + $0x8b] sm:$0xff]
      %v1307 = vld [vmem:[%s278 + $0x93] sm:$0xff]
      %v1308 = vld [vmem:[%s278 + $0x9b] sm:$0x3f]
      %v1309 = vadd.f32 %v1203, %v1291
      %v1310 = vadd.f32 %v1208, %v1292
      %v1311 = vadd.f32 %v1213, %v1293
      %v1312 = vadd.f32 %v1218, %v1294
      %v1313 = vadd.f32 %v1223, %v1295
      %v1314 = vadd.f32 %v1228, %v1296
      %v1315 = vadd.f32 %v1233, %v1297
      %v1316 = vadd.f32 %v1238, %v1298
      %v1317 = vadd.f32 %v1243, %v1299
      %v1318 = vadd.f32 %v1248, %v1300
      %v1319 = vadd.f32 %v1253, %v1301
      %v1320 = vadd.f32 %v1258, %v1302
      %v1321 = vadd.f32 %v1263, %v1303
      %v1322 = vadd.f32 %v1268, %v1304
      %v1323 = vadd.f32 %v1273, %v1305
      %v1324 = vadd.f32 %v1278, %v1306
      %v1325 = vadd.f32 %v1283, %v1307
      %v1326 = vadd.f32 %v1288, %v1308
      %1327 = vst [vmem:[%s287] sm:$0xff] %v1309
      %1328 = vst [vmem:[%s287 + $0x8] sm:$0xff] %v1310
      %1329 = vst [vmem:[%s287 + $0x10] sm:$0xff] %v1311
      %1330 = vst [vmem:[%s287 + $0x18] sm:$0xff] %v1312
      %1331 = vst [vmem:[%s287 + $0x20] sm:$0xff] %v1313
      %1332 = vst [vmem:[%s287 + $0x28] sm:$0xff] %v1314
      %1333 = vst [vmem:[%s287 + $0x30] sm:$0xff] %v1315
      %1334 = vst [vmem:[%s287 + $0x38] sm:$0xff] %v1316
      %1335 = vst [vmem:[%s287 + $0x40] sm:$0xff] %v1317
      %1336 = vst [vmem:[%s287 + $0x48] sm:$0xff] %v1318
      %1337 = vst [vmem:[%s287 + $0x50] sm:$0xff] %v1319
      %1338 = vst [vmem:[%s287 + $0x58] sm:$0xff] %v1320
      %1339 = vst [vmem:[%s287 + $0x60] sm:$0xff] %v1321
      %1340 = vst [vmem:[%s287 + $0x68] sm:$0xff] %v1322
      %1341 = vst [vmem:[%s287 + $0x70] sm:$0xff] %v1323
      %1342 = vst [vmem:[%s287 + $0x78] sm:$0xff] %v1324
      %1343 = vst [vmem:[%s287 + $0x80] sm:$0xff] %v1325
      %1344 = vst [vmem:[%s287 + $0x88] sm:$0x3f] %v1326
      %p1345 = scmp.lt.s32.totalorder %s21, 1
      %s1346 = scalar_select %p1345, %s21, 1
      %p1347 = scmp.lt.s32.totalorder %s22, 1
      %s1348 = scalar_select %p1347, %s22, 1
      %s1349 = smul.addr %s1348, 18
      %s1350 = smul.addr %s1346, 36
      %s1351 = sadd.s32 %s1349, %s1350
      %s1352 = smul.addr %s1351, 8
      %s1353 = scalar_lea.vmem %s6, %s1352
      // Predicated region
      $region45: #{inverted_residual.1} parent=43 // pred_check
        %p1354 = pneg %p182
      $region46: #{inverted_residual.1} parent=43 // pred_check_branch
        %1356 = sbr.rel (%p1354) target = $region48
      $region47: #{inverted_residual.1} parent=43 // pred_region
        _
      $region48: #{inverted_residual.1} parent=43 // pred_fallthru
        _
    $region44: #{inverted_residual.1} parent=5 // pred_fallthru
      _
    %p1357 = scmp.le.s32.totalorder 2, %s12
    // Predicated region
    $region49: #{inverted_residual.1} parent=5 // pred_check
      %p1358 = pneg %p1357
    $region50: #{inverted_residual.1} parent=5 // pred_check_branch
      %1360 = sbr.rel (%p1358) target = $region52
    $region51: #{inverted_residual.1} parent=5 // pred_region
      %s1361 = ssub.s32 %s12, 2
      // Predicated region
      $region53: #{inverted_residual.1} parent=51 // pred_check
        %p1362 = pneg %p188
      $region54: #{inverted_residual.1} parent=51 // pred_check_branch
        %1364 = sbr.rel (%p1362) target = $region56
      $region55: #{inverted_residual.1} parent=51 // pred_region
        %p1365 = scmp.lt.s32.totalorder %s23, 1
        %s1366 = scalar_select %p1365, %s23, 1
        %p1367 = scmp.lt.s32.totalorder %s24, 1
        %s1368 = scalar_select %p1367, %s24, 1
        %s1369 = smul.addr %s1368, 18
        %s1370 = smul.addr %s1366, 36
        %s1371 = sadd.s32 %s1369, %s1370
        %s1372 = smul.addr %s1371, 8
        %s1373 = scalar_lea.vmem %s6, %s1372
      $region56: #{inverted_residual.1} parent=51 // pred_fallthru
        _
    $region52: #{inverted_residual.1} parent=5 // pred_fallthru
      _
  $region6: #{inverted_residual.1} parent=0 // loop_footer
    %s16 = sadd.s32 1, %s12
  $region7: #{inverted_residual.1} parent=0 // loop_footer_branch
    %11 = sbr.rel target = $region3
  $region8: #{inverted_residual.1} parent=0 // loop_exit
    _

</llo_original>
